<compile_context>
chip_gen: v5e
topology: v5e:2x2
jax: 0.10.0
libtpu: 0.0.40
codegen_flags: <defaults>
</compile_context>

<pallas_src>
import jax
import jax.numpy as jnp
from jax.experimental import pallas as pl
from jax.experimental.pallas import tpu as pltpu


# ---------------------------------------------------------------------------
# small helpers
# ---------------------------------------------------------------------------

def _pick_tile(m, target=1024):
    """Largest row tile <= target that divides m (or m itself if small)."""
    if m <= target:
        return m
    for t in (1024, 512, 256, 128, 64, 32, 16, 8):
        if t <= target and m % t == 0:
            return t
    return m


def _ssp_row_tile(hw, target=128):
    """Lane-aware query-row tile for the ssp kernel.

    Returns (tq, hw_pad): tq is a multiple of 128 (lane-dense output block) or
    equals the full (possibly padded) HW; hw_pad is hw rounded up to a multiple
    of 128 when padding is required.
    """
    for t in (512, 256, 128):
        if t <= max(target, 128) and hw % t == 0:
            return t, hw
    if hw <= 1024:                       # small map: single full-width tile
        return hw, hw
    hw_pad = ((hw + 127) // 128) * 128   # pad keys; pad columns get zero mask
    return 128, hw_pad


# ---------------------------------------------------------------------------
# Pallas kernels
# ---------------------------------------------------------------------------

def _mlp2_kernel(x_ref, w0_ref, b0_ref, w1_ref, b1_ref, o_ref):
    """relu(relu(x@w0+b0)@w1+b1) — two fused layers, bf16 MXU operands."""
    x = x_ref[...].astype(jnp.bfloat16)
    h = jnp.dot(x, w0_ref[...].astype(jnp.bfloat16),
                preferred_element_type=jnp.float32)
    h = jnp.maximum(h + b0_ref[...], 0.0)
    y = jnp.dot(h.astype(jnp.bfloat16), w1_ref[...].astype(jnp.bfloat16),
                preferred_element_type=jnp.float32)
    o_ref[...] = jnp.maximum(y + b1_ref[...], 0.0).astype(o_ref.dtype)


def fused_mlp2(x, w0, b0, w1, b1, out_dtype=jnp.bfloat16):
    """x:(M,K) -> (M,N1) bf16; two dense+relu layers fused into one pallas_call."""
    M, K = x.shape
    N0 = w0.shape[1]
    N1 = w1.shape[1]
    tm = _pick_tile(M)
    return pl.pallas_call(
        _mlp2_kernel,
        out_shape=jax.ShapeDtypeStruct((M, N1), out_dtype),
        grid=(M // tm,),
        in_specs=[pl.BlockSpec((tm, K), lambda i: (i, 0)),
                  pl.BlockSpec((K, N0), lambda i: (0, 0)),
                  pl.BlockSpec((1, N0), lambda i: (0, 0)),
                  pl.BlockSpec((N0, N1), lambda i: (0, 0)),
                  pl.BlockSpec((1, N1), lambda i: (0, 0))],
        out_specs=pl.BlockSpec((tm, N1), lambda i: (i, 0)),
        compiler_params=pltpu.CompilerParams(
            dimension_semantics=("parallel",)),
    )(x, w0, b0, w1, b1)


def _masked_avg2_kernel(f_ref, m_ref, o_ref):
    """Fused fg+bg masked average pooling: one (2,HW)x(HW,C) MXU dot per batch."""
    f = f_ref[0]                                           # (HW, C) bf16
    m = m_ref[0]                                           # (2, HW) f32
    s = jnp.dot(m.astype(jnp.bfloat16), f,                 # (2, C)
                preferred_element_type=jnp.float32)
    inv = pl.reciprocal(jnp.sum(m, axis=1, keepdims=True) + 1e-5, approx=True)
    o_ref[...] = (s * inv)[None]


def masked_average_pooling2(feat, masks2):
    """feat:(B,HW,C) bf16, masks2:(B,2,HW) f32 -> (B,2,C) f32 (fg row 0 = masks row 0)."""
    B, HW, C = feat.shape
    return pl.pallas_call(
        _masked_avg2_kernel,
        out_shape=jax.ShapeDtypeStruct((B, 2, C), jnp.float32),
        grid=(B,),
        in_specs=[pl.BlockSpec((1, HW, C), lambda b: (b, 0, 0)),
                  pl.BlockSpec((1, 2, HW), lambda b: (b, 0, 0))],
        out_specs=pl.BlockSpec((1, 2, C), lambda b: (b, 0, 0)),
        compiler_params=pltpu.CompilerParams(
            dimension_semantics=("parallel",)),
    )(feat, masks2)


_NT_DIMS = (((1,), (1,)), ((), ()))   # contract channel axis of both operands


def _cosine_global_kernel(f_ref, p_ref, o_ref):
    """cos(feat, stacked global [bg,fg] prototypes)*10, output lane-dense (1,2,HW)."""
    f = f_ref[0]                                           # (HW, C) bf16
    p = p_ref[0]                                           # (2, C) f32, rows [bg, fg]
    eps = jnp.float32(1e-8)
    ones = jnp.ones((1, f.shape[1]), jnp.bfloat16)
    # feature norms as an MXU matvec -> result already in (1, HW) row layout
    nf = jnp.sqrt(jax.lax.dot_general(ones, f * f, _NT_DIMS,
                                      preferred_element_type=jnp.float32))
    npro = jnp.sqrt(jnp.sum(p * p, axis=1, keepdims=True))           # (2, 1)
    nums = jax.lax.dot_general(p.astype(jnp.bfloat16), f, _NT_DIMS,  # (2, HW)
                               preferred_element_type=jnp.float32)
    sim = nums * pl.reciprocal(jnp.maximum(nf * npro, eps), approx=True)
    o_ref[...] = (sim * 10.0)[None]


def similarity_global(feat_q, fg_proto, bg_proto):
    """feat_q:(B,HW,C) bf16, protos:(B,C) f32 -> (B,2,HW) logits (bg,fg)*10."""
    B, HW, C = feat_q.shape
    protos = jnp.stack([bg_proto, fg_proto], axis=1)       # (B, 2, C), order bg/fg
    return pl.pallas_call(
        _cosine_global_kernel,
        out_shape=jax.ShapeDtypeStruct((B, 2, HW), jnp.float32),
        grid=(B,),
        in_specs=[pl.BlockSpec((1, HW, C), lambda b: (b, 0, 0)),
                  pl.BlockSpec((1, 2, C), lambda b: (b, 0, 0))],
        out_specs=pl.BlockSpec((1, 2, HW), lambda b: (b, 0, 0)),
        compiler_params=pltpu.CompilerParams(
            dimension_semantics=("parallel",)),
    )(feat_q, protos)


def ssp_similarity(feat_q, bg_mask_row, fg_proto_1, ssbp_1, *, row_tile=128):
    """Fused ssp bg branch: masked gram softmax -> local bg prototypes ->
    0.3*ssbp + 0.7*asbp lerp -> second cosine similarity.

    feat_q:(B,HW,C) bf16, bg_mask_row:(B,1,HW) f32, fg_proto_1/ssbp_1:(B,C) f32
    -> (B,2,HW) f32 logits (bg,fg)*10.
    """
    B, HW, C = feat_q.shape
    tq, hw_pad = _ssp_row_tile(HW, row_tile)
    fq, wbg = feat_q, bg_mask_row
    if hw_pad != HW:
        # pad keys with zero features and zero bg-mask; softmax/pooling ignore them
        fq = jnp.pad(fq, ((0, 0), (0, hw_pad - HW), (0, 0)))
        wbg = jnp.pad(wbg, ((0, 0), (0, 0), (0, hw_pad - HW)))
    R = hw_pad // tq

    def kernel(fq_ref, wbg_ref, fg1_ref, ssbp_ref, o_ref, fkn_ref):
        r = pl.program_id(1)
        fk = fq_ref[0]              # (HW, C) bf16 keys/values (resident across r)
        wbg_v = wbg_ref[0]          # (1, HW) f32 0/1 background selection
        fg1 = fg1_ref[0]            # (1, C)  f32 mixed fg prototype
        ssbp = ssbp_ref[0]          # (1, C)  f32 self-support bg prototype
        eps = jnp.float32(1e-8)

        # --- key normalization hoisted: once per batch (r == 0) --------------
        @pl.when(r == 0)
        def _():
            fk32 = fk.astype(jnp.float32)
            inv_nk = jax.lax.rsqrt(
                jnp.sum(fk32 * fk32, axis=1, keepdims=True) + 1e-12)
            fkn_ref[...] = (fk32 * inv_nk).astype(jnp.bfloat16)

        start = pl.multiple_of(r * tq, 8)
        fr16 = fq_ref[0, pl.ds(start, tq), :]              # (Tq, C) bf16 query rows
        frn = fkn_ref[pl.ds(start, tq), :]                  # (Tq, C) bf16 normalized
        fkn = fkn_ref[...]                                  # (HW, C) bf16 normalized

        # --- masked softmax over keys (gram on MXU, one f32 exp pass) --------
        g = jax.lax.dot_general(frn, fkn, _NT_DIMS,
                                preferred_element_type=jnp.float32) * 2.0
        m = jnp.max(g, axis=-1, keepdims=True)              # safe: |g| <= 2
        e = jnp.exp(g - m)
        e_bg = e * wbg_v                                     # zero non-selected keys
        inv_den = pl.reciprocal(jnp.sum(e_bg, axis=-1, keepdims=True), approx=True)
        sm_bg = (e_bg * inv_den).astype(jnp.bfloat16)        # (Tq, HW)

        # local bg prototype per position, lerped with the global ssbp
        bg_local = jnp.dot(sm_bg, fk, preferred_element_type=jnp.float32)  # (Tq, C)
        bg_pp = 0.3 * ssbp + 0.7 * bg_local                                # (Tq, C)

        # --- cosine similarities, lane-dense (1, Tq) rows via MXU matvecs ----
        fr32 = fr16.astype(jnp.float32)
        ones = jnp.ones((1, fr32.shape[1]), jnp.float32)
        nf = jnp.sqrt(jax.lax.dot_general(ones, fr32 * fr32, _NT_DIMS,
                                          preferred_element_type=jnp.float32))
        nbg = jnp.sqrt(jax.lax.dot_general(ones, bg_pp * bg_pp, _NT_DIMS,
                                           preferred_element_type=jnp.float32))
        nfg = jnp.sqrt(jnp.sum(fg1 * fg1, axis=1, keepdims=True))          # (1, 1)
        num_bg = jax.lax.dot_general(ones, fr32 * bg_pp, _NT_DIMS,
                                     preferred_element_type=jnp.float32)
        num_fg = jax.lax.dot_general(fg1.astype(jnp.bfloat16), fr16, _NT_DIMS,
                                     preferred_element_type=jnp.float32)
        sim_bg = num_bg * pl.reciprocal(jnp.maximum(nf * nbg, eps), approx=True)
        sim_fg = num_fg * pl.reciprocal(jnp.maximum(nf * nfg, eps), approx=True)
        o_ref[...] = (jnp.concatenate([sim_bg, sim_fg], axis=0) * 10.0)[None]

    out = pl.pallas_call(
        kernel,
        out_shape=jax.ShapeDtypeStruct((B, 2, hw_pad), jnp.float32),
        grid=(B, R),
        in_specs=[pl.BlockSpec((1, hw_pad, C), lambda b, r: (b, 0, 0)),   # keys
                  pl.BlockSpec((1, 1, hw_pad), lambda b, r: (b, 0, 0)),   # bg mask
                  pl.BlockSpec((1, 1, C), lambda b, r: (b, 0, 0)),
                  pl.BlockSpec((1, 1, C), lambda b, r: (b, 0, 0))],
        out_specs=pl.BlockSpec((1, 2, tq), lambda b, r: (b, 0, r)),
        scratch_shapes=[pltpu.VMEM((hw_pad, C), jnp.bfloat16)],
        compiler_params=pltpu.CompilerParams(
            dimension_semantics=("parallel", "arbitrary"),
            vmem_limit_bytes=32 * 1024 * 1024),
    )(fq, wbg, fg_proto_1[:, None, :], ssbp_1[:, None, :])
    return out[:, :, :HW]


# ---------------------------------------------------------------------------
# JAX glue: bilinear resize (align_corners=True), patchify, mask selection
# ---------------------------------------------------------------------------

def _resize_matrix(n_in, n_out):
    if n_in == 1:
        return jnp.ones((n_out, 1), jnp.float32)
    pos = jnp.arange(n_out, dtype=jnp.float32) * (n_in - 1) / max(n_out - 1, 1)
    lo = jnp.clip(jnp.floor(pos), 0, n_in - 1).astype(jnp.int32)
    hi = jnp.clip(lo + 1, 0, n_in - 1)
    frac = pos - lo.astype(jnp.float32)
    rows = jnp.arange(n_out)
    M = jnp.zeros((n_out, n_in), jnp.float32)
    M = M.at[rows, lo].add(1.0 - frac)
    M = M.at[rows, hi].add(frac)
    return M


def bilinear_resize_2d(x, out_h, out_w):
    """x: (..., h, w) -> (..., out_h, out_w), bilinear, align_corners=True."""
    h, w = x.shape[-2], x.shape[-1]
    Mh = _resize_matrix(h, out_h)
    Mw = _resize_matrix(w, out_w)
    return jnp.einsum('oh,pw,...hw->...op', Mh, Mw, x)


def patchify_nchw(x, p):
    B, C, H, W = x.shape
    x = x.reshape(B, C, H // p, p, W // p, p)
    x = x.transpose(0, 2, 4, 1, 3, 5)
    return x.reshape(B, (H // p) * (W // p), C * p * p)


def patchify_cl(x, p):
    B, h, w, C = x.shape
    x = x.reshape(B, h // p, p, w // p, p, C)
    x = x.transpose(0, 1, 3, 2, 4, 5)
    return x.reshape(B, (h // p) * (w // p), p * p * C)


def selection_mask(pred, thres, k=12):
    """pred:(B,HW). Threshold selection with top-k(12) fallback (as in ssp_func)."""
    B, HW = pred.shape
    sel = (pred > thres).astype(jnp.float32)
    _, idx = jax.lax.top_k(pred, k)
    topk_mask = jnp.minimum(jax.nn.one_hot(idx, HW, dtype=jnp.float32).sum(axis=1), 1.0)
    has = jnp.sum(sel, axis=1, keepdims=True) > 0
    return jnp.where(has, sel, topk_mask)


# ---------------------------------------------------------------------------
# Synthetic backbone (stand-in for pretrained ResNet layer0..layer3), C = 128
# ---------------------------------------------------------------------------

def init_params(key):
    def dense(k, fan_in, fan_out):
        kw, kb = jax.random.split(k)
        w = jax.random.normal(kw, (fan_in, fan_out), jnp.float32) * jnp.sqrt(2.0 / fan_in)
        b = jax.random.normal(kb, (1, fan_out), jnp.float32) * 0.01
        return w, b
    k0, k1, k2, k3 = jax.random.split(key, 4)
    return {
        "layer0": dense(k0, 3 * 8 * 8, 128),    # 8x8 stride-8 patch conv + relu
        "layer1": dense(k1, 128, 128),          # 1x1 conv + relu
        "layer2": dense(k2, 128 * 4, 128),      # 2x2 stride-2 patch conv + relu
        "layer3": dense(k3, 128, 128),          # 1x1 conv + relu
    }


def backbone(params, img):
    """img:(B,3,H,W) NCHW -> channel-last stride-16 bf16 features (B, HW, 128), (h,w)."""
    B, _, H, W = img.shape
    h0, w0 = H // 8, W // 8
    x = patchify_nchw(img, 8)                                   # (B, h0*w0, 192)
    w0_, b0_ = params["layer0"]
    w1_, b1_ = params["layer1"]
    x = fused_mlp2(x.reshape(-1, x.shape[-1]), w0_, b0_, w1_, b1_)   # bf16
    x = patchify_cl(x.reshape(B, h0, w0, -1), 2)                # (B, h1*w1, 512) bf16
    fh, fw = h0 // 2, w0 // 2
    w2_, b2_ = params["layer2"]
    w3_, b3_ = params["layer3"]
    x = fused_mlp2(x.reshape(-1, x.shape[-1]), w2_, b2_, w3_, b3_)   # bf16
    return x.reshape(B, fh * fw, -1), fh, fw


# ---------------------------------------------------------------------------
# SSPNet forward (eval mode, refine=False)
# ---------------------------------------------------------------------------

def sspnet_forward(params, img_s_list, mask_s_list, img_q, mask_q):
    del mask_q  # only used for training-mode auxiliary outputs
    B, _, H, W = img_q.shape

    # support / query features (bf16, channel-last)
    feat_s_list = [backbone(params, img_s)[0] for img_s in img_s_list]
    feat_q, hf, wf = backbone(params, img_q)                    # (B, HW, 128)
    HW = hf * wf

    # fused fg+bg masked average pooling on each support shot
    fg_feats, bg_feats = [], []
    for fs, ms in zip(feat_s_list, mask_s_list):
        m_fg = bilinear_resize_2d((ms == 1).astype(jnp.float32), hf, wf).reshape(B, 1, HW)
        m_bg = bilinear_resize_2d((ms == 0).astype(jnp.float32), hf, wf).reshape(B, 1, HW)
        pooled = masked_average_pooling2(fs, jnp.concatenate([m_fg, m_bg], axis=1))
        fg_feats.append(pooled[:, 0])
        bg_feats.append(pooled[:, 1])
    fg_prototypes = jnp.mean(jnp.stack(fg_feats, 0), axis=0)    # (B, C)
    bg_prototypes = jnp.mean(jnp.stack(bg_feats, 0), axis=0)    # (B, C)

    # similarity_0 against global prototypes (lane-dense (B, 2, HW), order bg/fg)
    similarity_0 = similarity_global(feat_q, fg_prototypes, bg_prototypes)

    # ssp_func: self-support prototype mining (eval / refine=False path)
    pred = jax.nn.softmax(similarity_0, axis=1)                 # (B, 2, HW)
    fg_mask = selection_mask(pred[:, 1], 0.7).reshape(B, 1, HW)
    bg_mask = selection_mask(pred[:, 0], 0.6).reshape(B, 1, HW)

    pooled_q = masked_average_pooling2(
        feat_q, jnp.concatenate([fg_mask, bg_mask], axis=1))    # (B, 2, C)
    ssfp_1, ssbp_1 = pooled_q[:, 0], pooled_q[:, 1]
    fg_prototypes_1 = 0.5 * fg_prototypes + 0.5 * ssfp_1        # (B, C)
    # NOTE: asfp_1 (fg local prototypes) is unused when refine=False / eval, so the
    # fg gram/softmax branch of ssp_func is not computed at all.

    # fused: bg local prototypes + (0.3*ssbp + 0.7*asbp) lerp + similarity_1 cosine
    similarity_1 = ssp_similarity(feat_q, bg_mask, fg_prototypes_1, ssbp_1)

    similarity_1 = similarity_1.reshape(B, 2, hf, wf)
    similarity_1 = bilinear_resize_2d(similarity_1, H, W)       # (B, 2, H, W)
    return [similarity_1]


# ---------------------------------------------------------------------------
# main
# ---------------------------------------------------------------------------

if __name__ == "__main__":
    key = jax.random.PRNGKey(0)
    k_par, k_s0, k_s1, k_m0, k_m1, k_q, k_mq = jax.random.split(key, 7)

    B, H, W = 2, 64, 64
    params = init_params(k_par)

    img_s_list = [jax.random.normal(k_s0, (B, 3, H, W), jnp.float32),
                  jax.random.normal(k_s1, (B, 3, H, W), jnp.float32)]
    mask_s_list = [(jax.random.uniform(k_m0, (B, H, W)) > 0.5).astype(jnp.int32),
                   (jax.random.uniform(k_m1, (B, H, W)) > 0.5).astype(jnp.int32)]
    img_q = jax.random.normal(k_q, (B, 3, H, W), jnp.float32)
    mask_q = (jax.random.uniform(k_mq, (B, H, W)) > 0.5).astype(jnp.int32)

    fwd = jax.jit(sspnet_forward)
    out_list = fwd(params, img_s_list, mask_s_list, img_q, mask_q)
    out = jax.block_until_ready(out_list[0])

    assert out.shape == (B, 2, H, W), out.shape
    assert bool(jnp.all(jnp.isfinite(out)))
    print("KERNEL_OK")
</pallas_src>

<mosaic_0001>
module attributes {stable_mosaic.version = 11 : i64} {
  func.func @_mlp2_kernel(%arg0: i32, %arg1: memref<128x192xf32, #tpu.memory_space<vmem>>, %arg2: memref<192x128xf32, #tpu.memory_space<vmem>>, %arg3: memref<1x128xf32, #tpu.memory_space<vmem>>, %arg4: memref<128x128xf32, #tpu.memory_space<vmem>>, %arg5: memref<1x128xf32, #tpu.memory_space<vmem>>, %arg6: memref<128x128xbf16, #tpu.memory_space<vmem>>) attributes {dimension_semantics = [#tpu.dimension_semantics<parallel>], iteration_bounds = array<i64: 1>, scalar_prefetch = 0 : i64, scratch_operands = 0 : i64, tpu.core_type = #tpu.core_type<tc>, window_params = [{transform_indices = @transform_0, window_bounds = array<i64: 128, 192>}, {pipeline_mode = #tpu.pipeline_mode<synchronous>, transform_indices = @transform_1, window_bounds = array<i64: 192, 128>}, {pipeline_mode = #tpu.pipeline_mode<synchronous>, transform_indices = @transform_2, window_bounds = array<i64: 1, 128>}, {pipeline_mode = #tpu.pipeline_mode<synchronous>, transform_indices = @transform_3, window_bounds = array<i64: 128, 128>}, {pipeline_mode = #tpu.pipeline_mode<synchronous>, transform_indices = @transform_4, window_bounds = array<i64: 1, 128>}, {transform_indices = @transform_5, window_bounds = array<i64: 128, 128>}]} {
    %c0 = arith.constant 0 : index
    %c0_0 = arith.constant 0 : index
    %0 = vector.load %arg1[%c0, %c0_0] : memref<128x192xf32, #tpu.memory_space<vmem>>, vector<128x192xf32>
    %1 = arith.truncf %0 : vector<128x192xf32> to vector<128x192xbf16>
    %c0_1 = arith.constant 0 : index
    %c0_2 = arith.constant 0 : index
    %2 = vector.load %arg2[%c0_1, %c0_2] : memref<192x128xf32, #tpu.memory_space<vmem>>, vector<192x128xf32>
    %3 = arith.truncf %2 : vector<192x128xf32> to vector<192x128xbf16>
    %cst = arith.constant dense<0.000000e+00> : vector<128x128xf32>
    %4 = tpu.matmul %1, %3, %cst {dimension_numbers = #tpu.dot_dimension_numbers<[1], [0], [0], [1], [0, 0, 1, 1], [], []>} : vector<128x192xbf16>, vector<192x128xbf16>, vector<128x128xf32> -> vector<128x128xf32>
    %c0_3 = arith.constant 0 : index
    %c0_4 = arith.constant 0 : index
    %5 = vector.load %arg3[%c0_3, %c0_4] : memref<1x128xf32, #tpu.memory_space<vmem>>, vector<1x128xf32>
    %6 = vector.broadcast %5 : vector<1x128xf32> to vector<128x128xf32>
    %7 = arith.addf %4, %6 : vector<128x128xf32>
    %cst_5 = arith.constant 0.000000e+00 : f32
    %8 = vector.broadcast %cst_5 : f32 to vector<128x128xf32>
    %9 = arith.maximumf %7, %8 : vector<128x128xf32>
    %10 = arith.truncf %9 : vector<128x128xf32> to vector<128x128xbf16>
    %c0_6 = arith.constant 0 : index
    %c0_7 = arith.constant 0 : index
    %11 = vector.load %arg4[%c0_6, %c0_7] : memref<128x128xf32, #tpu.memory_space<vmem>>, vector<128x128xf32>
    %12 = arith.truncf %11 : vector<128x128xf32> to vector<128x128xbf16>
    %cst_8 = arith.constant dense<0.000000e+00> : vector<128x128xf32>
    %13 = tpu.matmul %10, %12, %cst_8 {dimension_numbers = #tpu.dot_dimension_numbers<[1], [0], [0], [1], [0, 0, 1, 1], [], []>} : vector<128x128xbf16>, vector<128x128xbf16>, vector<128x128xf32> -> vector<128x128xf32>
    %c0_9 = arith.constant 0 : index
    %c0_10 = arith.constant 0 : index
    %14 = vector.load %arg5[%c0_9, %c0_10] : memref<1x128xf32, #tpu.memory_space<vmem>>, vector<1x128xf32>
    %15 = vector.broadcast %14 : vector<1x128xf32> to vector<128x128xf32>
    %16 = arith.addf %13, %15 : vector<128x128xf32>
    %cst_11 = arith.constant 0.000000e+00 : f32
    %17 = vector.broadcast %cst_11 : f32 to vector<128x128xf32>
    %18 = arith.maximumf %16, %17 : vector<128x128xf32>
    %19 = arith.truncf %18 : vector<128x128xf32> to vector<128x128xbf16>
    %c0_12 = arith.constant 0 : index
    %c0_13 = arith.constant 0 : index
    %20 = vector.load %arg6[%c0_12, %c0_13] : memref<128x128xbf16, #tpu.memory_space<vmem>>, vector<128x128xbf16>
    tpu.vector_store %arg6[%c0_12, %c0_13], %19 {strides = array<i32>} : memref<128x128xbf16, #tpu.memory_space<vmem>>, vector<128x128xbf16>,
    return
  }
  func.func @transform_0(%arg0: i32) -> (i32, i32) {
    %c0_i32 = arith.constant 0 : i32
    %c0_i32_0 = arith.constant 0 : i32
    return %arg0, %c0_i32 : i32, i32
  }
  func.func @transform_1(%arg0: i32) -> (i32, i32) {
    %c0_i32 = arith.constant 0 : i32
    %c0_i32_0 = arith.constant 0 : i32
    %c0_i32_1 = arith.constant 0 : i32
    return %c0_i32, %c0_i32_0 : i32, i32
  }
  func.func @transform_2(%arg0: i32) -> (i32, i32) {
    %c0_i32 = arith.constant 0 : i32
    %c0_i32_0 = arith.constant 0 : i32
    %c0_i32_1 = arith.constant 0 : i32
    return %c0_i32, %c0_i32_0 : i32, i32
  }
  func.func @transform_3(%arg0: i32) -> (i32, i32) {
    %c0_i32 = arith.constant 0 : i32
    %c0_i32_0 = arith.constant 0 : i32
    %c0_i32_1 = arith.constant 0 : i32
    return %c0_i32, %c0_i32_0 : i32, i32
  }
  func.func @transform_4(%arg0: i32) -> (i32, i32) {
    %c0_i32 = arith.constant 0 : i32
    %c0_i32_0 = arith.constant 0 : i32
    %c0_i32_1 = arith.constant 0 : i32
    return %c0_i32, %c0_i32_0 : i32, i32
  }
  func.func @transform_5(%arg0: i32) -> (i32, i32) {
    %c0_i32 = arith.constant 0 : i32
    %c0_i32_0 = arith.constant 0 : i32
    return %arg0, %c0_i32 : i32, i32
  }
}

module attributes {stable_mosaic.version = 11 : i64} {
  func.func @_mlp2_kernel(%arg0: i32, %arg1: memref<32x512xbf16, #tpu.memory_space<vmem>>, %arg2: memref<512x128xf32, #tpu.memory_space<vmem>>, %arg3: memref<1x128xf32, #tpu.memory_space<vmem>>, %arg4: memref<128x128xf32, #tpu.memory_space<vmem>>, %arg5: memref<1x128xf32, #tpu.memory_space<vmem>>, %arg6: memref<32x128xbf16, #tpu.memory_space<vmem>>) attributes {dimension_semantics = [#tpu.dimension_semantics<parallel>], iteration_bounds = array<i64: 1>, scalar_prefetch = 0 : i64, scratch_operands = 0 : i64, tpu.core_type = #tpu.core_type<tc>, window_params = [{transform_indices = @transform_0, window_bounds = array<i64: 32, 512>}, {pipeline_mode = #tpu.pipeline_mode<synchronous>, transform_indices = @transform_1, window_bounds = array<i64: 512, 128>}, {pipeline_mode = #tpu.pipeline_mode<synchronous>, transform_indices = @transform_2, window_bounds = array<i64: 1, 128>}, {pipeline_mode = #tpu.pipeline_mode<synchronous>, transform_indices = @transform_3, window_bounds = array<i64: 128, 128>}, {pipeline_mode = #tpu.pipeline_mode<synchronous>, transform_indices = @transform_4, window_bounds = array<i64: 1, 128>}, {transform_indices = @transform_5, window_bounds = array<i64: 32, 128>}]} {
    %c0 = arith.constant 0 : index
    %c0_0 = arith.constant 0 : index
    %0 = vector.load %arg1[%c0, %c0_0] : memref<32x512xbf16, #tpu.memory_space<vmem>>, vector<32x512xbf16>
    %c0_1 = arith.constant 0 : index
    %c0_2 = arith.constant 0 : index
    %1 = vector.load %arg2[%c0_1, %c0_2] : memref<512x128xf32, #tpu.memory_space<vmem>>, vector<512x128xf32>
    %2 = arith.truncf %1 : vector<512x128xf32> to vector<512x128xbf16>
    %cst = arith.constant dense<0.000000e+00> : vector<32x128xf32>
    %3 = tpu.matmul %0, %2, %cst {dimension_numbers = #tpu.dot_dimension_numbers<[1], [0], [0], [1], [0, 0, 1, 1], [], []>} : vector<32x512xbf16>, vector<512x128xbf16>, vector<32x128xf32> -> vector<32x128xf32>
    %c0_3 = arith.constant 0 : index
    %c0_4 = arith.constant 0 : index
    %4 = vector.load %arg3[%c0_3, %c0_4] : memref<1x128xf32, #tpu.memory_space<vmem>>, vector<1x128xf32>
    %5 = vector.broadcast %4 : vector<1x128xf32> to vector<32x128xf32>
    %6 = arith.addf %3, %5 : vector<32x128xf32>
    %cst_5 = arith.constant 0.000000e+00 : f32
    %7 = vector.broadcast %cst_5 : f32 to vector<32x128xf32>
    %8 = arith.maximumf %6, %7 : vector<32x128xf32>
    %9 = arith.truncf %8 : vector<32x128xf32> to vector<32x128xbf16>
    %c0_6 = arith.constant 0 : index
    %c0_7 = arith.constant 0 : index
    %10 = vector.load %arg4[%c0_6, %c0_7] : memref<128x128xf32, #tpu.memory_space<vmem>>, vector<128x128xf32>
    %11 = arith.truncf %10 : vector<128x128xf32> to vector<128x128xbf16>
    %cst_8 = arith.constant dense<0.000000e+00> : vector<32x128xf32>
    %12 = tpu.matmul %9, %11, %cst_8 {dimension_numbers = #tpu.dot_dimension_numbers<[1], [0], [0], [1], [0, 0, 1, 1], [], []>} : vector<32x128xbf16>, vector<128x128xbf16>, vector<32x128xf32> -> vector<32x128xf32>
    %c0_9 = arith.constant 0 : index
    %c0_10 = arith.constant 0 : index
    %13 = vector.load %arg5[%c0_9, %c0_10] : memref<1x128xf32, #tpu.memory_space<vmem>>, vector<1x128xf32>
    %14 = vector.broadcast %13 : vector<1x128xf32> to vector<32x128xf32>
    %15 = arith.addf %12, %14 : vector<32x128xf32>
    %cst_11 = arith.constant 0.000000e+00 : f32
    %16 = vector.broadcast %cst_11 : f32 to vector<32x128xf32>
    %17 = arith.maximumf %15, %16 : vector<32x128xf32>
    %18 = arith.truncf %17 : vector<32x128xf32> to vector<32x128xbf16>
    %c0_12 = arith.constant 0 : index
    %c0_13 = arith.constant 0 : index
    %19 = vector.load %arg6[%c0_12, %c0_13] : memref<32x128xbf16, #tpu.memory_space<vmem>>, vector<32x128xbf16>
    tpu.vector_store %arg6[%c0_12, %c0_13], %18 {strides = array<i32>} : memref<32x128xbf16, #tpu.memory_space<vmem>>, vector<32x128xbf16>,
    return
  }
  func.func @transform_0(%arg0: i32) -> (i32, i32) {
    %c0_i32 = arith.constant 0 : i32
    %c0_i32_0 = arith.constant 0 : i32
    return %arg0, %c0_i32 : i32, i32
  }
  func.func @transform_1(%arg0: i32) -> (i32, i32) {
    %c0_i32 = arith.constant 0 : i32
    %c0_i32_0 = arith.constant 0 : i32
    %c0_i32_1 = arith.constant 0 : i32
    return %c0_i32, %c0_i32_0 : i32, i32
  }
  func.func @transform_2(%arg0: i32) -> (i32, i32) {
    %c0_i32 = arith.constant 0 : i32
    %c0_i32_0 = arith.constant 0 : i32
    %c0_i32_1 = arith.constant 0 : i32
    return %c0_i32, %c0_i32_0 : i32, i32
  }
  func.func @transform_3(%arg0: i32) -> (i32, i32) {
    %c0_i32 = arith.constant 0 : i32
    %c0_i32_0 = arith.constant 0 : i32
    %c0_i32_1 = arith.constant 0 : i32
    return %c0_i32, %c0_i32_0 : i32, i32
  }
  func.func @transform_4(%arg0: i32) -> (i32, i32) {
    %c0_i32 = arith.constant 0 : i32
    %c0_i32_0 = arith.constant 0 : i32
    %c0_i32_1 = arith.constant 0 : i32
    return %c0_i32, %c0_i32_0 : i32, i32
  }
  func.func @transform_5(%arg0: i32) -> (i32, i32) {
    %c0_i32 = arith.constant 0 : i32
    %c0_i32_0 = arith.constant 0 : i32
    return %arg0, %c0_i32 : i32, i32
  }
}

module attributes {stable_mosaic.version = 11 : i64} {
  func.func @_masked_avg2_kernel(%arg0: i32, %arg1: memref<1x16x128xbf16, #tpu.memory_space<vmem>>, %arg2: memref<1x2x16xf32, #tpu.memory_space<vmem>>, %arg3: memref<1x2x128xf32, #tpu.memory_space<vmem>>) attributes {dimension_semantics = [#tpu.dimension_semantics<parallel>], iteration_bounds = array<i64: 2>, scalar_prefetch = 0 : i64, scratch_operands = 0 : i64, tpu.core_type = #tpu.core_type<tc>, window_params = [{transform_indices = @transform_0, window_bounds = array<i64: 1, 16, 128>}, {transform_indices = @transform_1, window_bounds = array<i64: 1, 2, 16>}, {transform_indices = @transform_2, window_bounds = array<i64: 1, 2, 128>}]} {
    %c0 = arith.constant 0 : index
    %c0_0 = arith.constant 0 : index
    %c0_1 = arith.constant 0 : index
    %0 = vector.load %arg1[%c0, %c0_0, %c0_1] : memref<1x16x128xbf16, #tpu.memory_space<vmem>>, vector<1x16x128xbf16>
    %1 = vector.shape_cast %0 : vector<1x16x128xbf16> to vector<16x128xbf16>
    %c0_2 = arith.constant 0 : index
    %c0_3 = arith.constant 0 : index
    %c0_4 = arith.constant 0 : index
    %2 = vector.load %arg2[%c0_2, %c0_3, %c0_4] : memref<1x2x16xf32, #tpu.memory_space<vmem>>, vector<1x2x16xf32>
    %3 = vector.shape_cast %2 : vector<1x2x16xf32> to vector<2x16xf32>
    %4 = arith.truncf %3 : vector<2x16xf32> to vector<2x16xbf16>
    %cst = arith.constant dense<0.000000e+00> : vector<2x128xf32>
    %5 = tpu.matmul %4, %1, %cst {dimension_numbers = #tpu.dot_dimension_numbers<[1], [0], [0], [1], [0, 0, 1, 1], [], []>} : vector<2x16xbf16>, vector<16x128xbf16>, vector<2x128xf32> -> vector<2x128xf32>
    %cst_5 = arith.constant dense<0.000000e+00> : vector<2xf32>
    %6 = vector.multi_reduction <add>, %3, %cst_5 [1] : vector<2x16xf32> to vector<2xf32>
    %7 = vector.shape_cast %6 : vector<2xf32> to vector<2x1xf32>
    %cst_6 = arith.constant 9.99999974E-6 : f32
    %8 = vector.broadcast %cst_6 : f32 to vector<2x1xf32>
    %9 = arith.addf %7, %8 : vector<2x1xf32>
    %10 = tpu.reciprocal %9 {approx = true} : vector<2x1xf32> -> vector<2x1xf32>
    %11 = vector.broadcast %10 : vector<2x1xf32> to vector<2x128xf32>
    %12 = arith.mulf %5, %11 : vector<2x128xf32>
    %13 = vector.shape_cast %12 : vector<2x128xf32> to vector<1x2x128xf32>
    %c0_7 = arith.constant 0 : index
    %c0_8 = arith.constant 0 : index
    %c0_9 = arith.constant 0 : index
    %14 = vector.load %arg3[%c0_7, %c0_8, %c0_9] : memref<1x2x128xf32, #tpu.memory_space<vmem>>, vector<1x2x128xf32>
    tpu.vector_store %arg3[%c0_7, %c0_8, %c0_9], %13 {strides = array<i32>} : memref<1x2x128xf32, #tpu.memory_space<vmem>>, vector<1x2x128xf32>,
    return
  }
  func.func @transform_0(%arg0: i32) -> (i32, i32, i32) {
    %c0_i32 = arith.constant 0 : i32
    %c0_i32_0 = arith.constant 0 : i32
    %c0_i32_1 = arith.constant 0 : i32
    return %arg0, %c0_i32, %c0_i32_0 : i32, i32, i32
  }
  func.func @transform_1(%arg0: i32) -> (i32, i32, i32) {
    %c0_i32 = arith.constant 0 : i32
    %c0_i32_0 = arith.constant 0 : i32
    %c0_i32_1 = arith.constant 0 : i32
    return %arg0, %c0_i32, %c0_i32_0 : i32, i32, i32
  }
  func.func @transform_2(%arg0: i32) -> (i32, i32, i32) {
    %c0_i32 = arith.constant 0 : i32
    %c0_i32_0 = arith.constant 0 : i32
    %c0_i32_1 = arith.constant 0 : i32
    return %arg0, %c0_i32, %c0_i32_0 : i32, i32, i32
  }
}

module attributes {stable_mosaic.version = 11 : i64} {
  func.func @_cosine_global_kernel(%arg0: i32, %arg1: memref<1x16x128xbf16, #tpu.memory_space<vmem>>, %arg2: memref<1x2x128xf32, #tpu.memory_space<vmem>>, %arg3: memref<1x2x16xf32, #tpu.memory_space<vmem>>) attributes {dimension_semantics = [#tpu.dimension_semantics<parallel>], iteration_bounds = array<i64: 2>, scalar_prefetch = 0 : i64, scratch_operands = 0 : i64, tpu.core_type = #tpu.core_type<tc>, window_params = [{transform_indices = @transform_0, window_bounds = array<i64: 1, 16, 128>}, {transform_indices = @transform_1, window_bounds = array<i64: 1, 2, 128>}, {transform_indices = @transform_2, window_bounds = array<i64: 1, 2, 16>}]} {
    %c0 = arith.constant 0 : index
    %c0_0 = arith.constant 0 : index
    %c0_1 = arith.constant 0 : index
    %0 = vector.load %arg1[%c0, %c0_0, %c0_1] : memref<1x16x128xbf16, #tpu.memory_space<vmem>>, vector<1x16x128xbf16>
    %1 = vector.shape_cast %0 : vector<1x16x128xbf16> to vector<16x128xbf16>
    %c0_2 = arith.constant 0 : index
    %c0_3 = arith.constant 0 : index
    %c0_4 = arith.constant 0 : index
    %2 = vector.load %arg2[%c0_2, %c0_3, %c0_4] : memref<1x2x128xf32, #tpu.memory_space<vmem>>, vector<1x2x128xf32>
    %3 = vector.shape_cast %2 : vector<1x2x128xf32> to vector<2x128xf32>
    %cst = arith.constant 1.000000e+00 : bf16
    %4 = vector.broadcast %cst : bf16 to vector<1x128xbf16>
    %5 = arith.mulf %1, %1 : vector<16x128xbf16>
    %cst_5 = arith.constant dense<0.000000e+00> : vector<1x16xf32>
    %6 = tpu.matmul %4, %5, %cst_5 {dimension_numbers = #tpu.dot_dimension_numbers<[1], [1], [0], [0], [0, 0, 1, 0], [], []>} : vector<1x128xbf16>, vector<16x128xbf16>, vector<1x16xf32> -> vector<1x16xf32>
    %7 = math.sqrt %6 : vector<1x16xf32>
    %8 = arith.mulf %3, %3 : vector<2x128xf32>
    %cst_6 = arith.constant dense<0.000000e+00> : vector<2xf32>
    %9 = vector.multi_reduction <add>, %8, %cst_6 [1] : vector<2x128xf32> to vector<2xf32>
    %10 = vector.shape_cast %9 : vector<2xf32> to vector<2x1xf32>
    %11 = math.sqrt %10 : vector<2x1xf32>
    %12 = arith.truncf %3 : vector<2x128xf32> to vector<2x128xbf16>
    %cst_7 = arith.constant dense<0.000000e+00> : vector<2x16xf32>
    %13 = tpu.matmul %12, %1, %cst_7 {dimension_numbers = #tpu.dot_dimension_numbers<[1], [1], [0], [0], [0, 0, 1, 0], [], []>} : vector<2x128xbf16>, vector<16x128xbf16>, vector<2x16xf32> -> vector<2x16xf32>
    %14 = vector.broadcast %7 : vector<1x16xf32> to vector<2x16xf32>
    %15 = vector.broadcast %11 : vector<2x1xf32> to vector<2x16xf32>
    %16 = arith.mulf %14, %15 : vector<2x16xf32>
    %cst_8 = arith.constant 9.99999993E-9 : f32
    %17 = vector.broadcast %cst_8 : f32 to vector<2x16xf32>
    %18 = arith.maximumf %16, %17 : vector<2x16xf32>
    %19 = tpu.reciprocal %18 {approx = true} : vector<2x16xf32> -> vector<2x16xf32>
    %20 = arith.mulf %13, %19 : vector<2x16xf32>
    %cst_9 = arith.constant 1.000000e+01 : f32
    %21 = vector.broadcast %cst_9 : f32 to vector<2x16xf32>
    %22 = arith.mulf %20, %21 : vector<2x16xf32>
    %23 = vector.shape_cast %22 : vector<2x16xf32> to vector<1x2x16xf32>
    %c0_10 = arith.constant 0 : index
    %c0_11 = arith.constant 0 : index
    %c0_12 = arith.constant 0 : index
    %24 = vector.load %arg3[%c0_10, %c0_11, %c0_12] : memref<1x2x16xf32, #tpu.memory_space<vmem>>, vector<1x2x16xf32>
    tpu.vector_store %arg3[%c0_10, %c0_11, %c0_12], %23 {strides = array<i32>} : memref<1x2x16xf32, #tpu.memory_space<vmem>>, vector<1x2x16xf32>,
    return
  }
  func.func @transform_0(%arg0: i32) -> (i32, i32, i32) {
    %c0_i32 = arith.constant 0 : i32
    %c0_i32_0 = arith.constant 0 : i32
    %c0_i32_1 = arith.constant 0 : i32
    return %arg0, %c0_i32, %c0_i32_0 : i32, i32, i32
  }
  func.func @transform_1(%arg0: i32) -> (i32, i32, i32) {
    %c0_i32 = arith.constant 0 : i32
    %c0_i32_0 = arith.constant 0 : i32
    %c0_i32_1 = arith.constant 0 : i32
    return %arg0, %c0_i32, %c0_i32_0 : i32, i32, i32
  }
  func.func @transform_2(%arg0: i32) -> (i32, i32, i32) {
    %c0_i32 = arith.constant 0 : i32
    %c0_i32_0 = arith.constant 0 : i32
    %c0_i32_1 = arith.constant 0 : i32
    return %arg0, %c0_i32, %c0_i32_0 : i32, i32, i32
  }
}

module attributes {stable_mosaic.version = 11 : i64} {
  func.func @kernel(%arg0: i32, %arg1: i32, %arg2: memref<1x16x128xbf16, #tpu.memory_space<vmem>>, %arg3: memref<1x1x16xf32, #tpu.memory_space<vmem>>, %arg4: memref<1x1x128xf32, #tpu.memory_space<vmem>>, %arg5: memref<1x1x128xf32, #tpu.memory_space<vmem>>, %arg6: memref<1x2x16xf32, #tpu.memory_space<vmem>>, %arg7: memref<16x128xbf16, #tpu.memory_space<vmem>>) attributes {dimension_semantics = [#tpu.dimension_semantics<parallel>, #tpu.dimension_semantics<arbitrary>], iteration_bounds = array<i64: 2, 1>, scalar_prefetch = 0 : i64, scratch_operands = 1 : i64, tpu.core_type = #tpu.core_type<tc>, window_params = [{transform_indices = @transform_0, window_bounds = array<i64: 1, 16, 128>}, {transform_indices = @transform_1, window_bounds = array<i64: 1, 1, 16>}, {transform_indices = @transform_2, window_bounds = array<i64: 1, 1, 128>}, {transform_indices = @transform_3, window_bounds = array<i64: 1, 1, 128>}, {transform_indices = @transform_4, window_bounds = array<i64: 1, 2, 16>}]} {
    %c0 = arith.constant 0 : index
    %c0_0 = arith.constant 0 : index
    %c0_1 = arith.constant 0 : index
    %0 = vector.load %arg2[%c0, %c0_0, %c0_1] : memref<1x16x128xbf16, #tpu.memory_space<vmem>>, vector<1x16x128xbf16>
    %1 = vector.shape_cast %0 : vector<1x16x128xbf16> to vector<16x128xbf16>
    %c0_2 = arith.constant 0 : index
    %c0_3 = arith.constant 0 : index
    %c0_4 = arith.constant 0 : index
    %2 = vector.load %arg3[%c0_2, %c0_3, %c0_4] : memref<1x1x16xf32, #tpu.memory_space<vmem>>, vector<1x1x16xf32>
    %3 = vector.shape_cast %2 : vector<1x1x16xf32> to vector<1x16xf32>
    %c0_5 = arith.constant 0 : index
    %c0_6 = arith.constant 0 : index
    %c0_7 = arith.constant 0 : index
    %4 = vector.load %arg4[%c0_5, %c0_6, %c0_7] : memref<1x1x128xf32, #tpu.memory_space<vmem>>, vector<1x1x128xf32>
    %5 = vector.shape_cast %4 : vector<1x1x128xf32> to vector<1x128xf32>
    %c0_8 = arith.constant 0 : index
    %c0_9 = arith.constant 0 : index
    %c0_10 = arith.constant 0 : index
    %6 = vector.load %arg5[%c0_8, %c0_9, %c0_10] : memref<1x1x128xf32, #tpu.memory_space<vmem>>, vector<1x1x128xf32>
    %7 = vector.shape_cast %6 : vector<1x1x128xf32> to vector<1x128xf32>
    %c0_i32 = arith.constant 0 : i32
    %8 = arith.cmpi eq, %arg1, %c0_i32 : i32
    %9 = arith.extui %8 : i1 to i32
    %c0_i32_11 = arith.constant 0 : i32
    %10 = arith.cmpi ne, %9, %c0_i32_11 : i32
    scf.if %10 {
      %74 = arith.extf %1 : vector<16x128xbf16> to vector<16x128xf32>
      %75 = arith.mulf %74, %74 : vector<16x128xf32>
      %cst_35 = arith.constant dense<0.000000e+00> : vector<16xf32>
      %76 = vector.multi_reduction <add>, %75, %cst_35 [1] : vector<16x128xf32> to vector<16xf32>
      %77 = vector.shape_cast %76 : vector<16xf32> to vector<16x1xf32>
      %cst_36 = arith.constant 9.99999996E-13 : f32
      %78 = vector.broadcast %cst_36 : f32 to vector<16x1xf32>
      %79 = arith.addf %77, %78 : vector<16x1xf32>
      %80 = math.rsqrt %79 : vector<16x1xf32>
      %81 = vector.broadcast %80 : vector<16x1xf32> to vector<16x128xf32>
      %82 = arith.mulf %74, %81 : vector<16x128xf32>
      %83 = arith.truncf %82 : vector<16x128xf32> to vector<16x128xbf16>
      %c0_37 = arith.constant 0 : index
      %c0_38 = arith.constant 0 : index
      %84 = vector.load %arg7[%c0_37, %c0_38] : memref<16x128xbf16, #tpu.memory_space<vmem>>, vector<16x128xbf16>
      tpu.vector_store %arg7[%c0_37, %c0_38], %83 {strides = array<i32>} : memref<16x128xbf16, #tpu.memory_space<vmem>>, vector<16x128xbf16>,
    } else {
    }
    %c16_i32 = arith.constant 16 : i32
    %11 = arith.muli %arg1, %c16_i32 : i32
    %12 = tpu.assume_multiple %11, 8 : i32
    %c0_12 = arith.constant 0 : index
    %13 = arith.index_cast %12 : i32 to index
    %c0_13 = arith.constant 0 : index
    %14 = vector.load %arg2[%c0_12, %13, %c0_13] : memref<1x16x128xbf16, #tpu.memory_space<vmem>>, vector<1x16x128xbf16>
    %15 = vector.shape_cast %14 : vector<1x16x128xbf16> to vector<16x128xbf16>
    %16 = arith.index_cast %12 : i32 to index
    %c0_14 = arith.constant 0 : index
    %17 = vector.load %arg7[%16, %c0_14] : memref<16x128xbf16, #tpu.memory_space<vmem>>, vector<16x128xbf16>
    %c0_15 = arith.constant 0 : index
    %c0_16 = arith.constant 0 : index
    %18 = vector.load %arg7[%c0_15, %c0_16] : memref<16x128xbf16, #tpu.memory_space<vmem>>, vector<16x128xbf16>
    %cst = arith.constant dense<0.000000e+00> : vector<16x16xf32>
    %19 = tpu.matmul %17, %18, %cst {dimension_numbers = #tpu.dot_dimension_numbers<[1], [1], [0], [0], [0, 0, 1, 0], [], []>} : vector<16x128xbf16>, vector<16x128xbf16>, vector<16x16xf32> -> vector<16x16xf32>
    %cst_17 = arith.constant 2.000000e+00 : f32
    %20 = vector.broadcast %cst_17 : f32 to vector<16x16xf32>
    %21 = arith.mulf %19, %20 : vector<16x16xf32>
    %cst_18 = arith.constant dense<0xFF800000> : vector<16xf32>
    %22 = vector.multi_reduction <maximumf>, %21, %cst_18 [1] : vector<16x16xf32> to vector<16xf32>
    %23 = vector.shape_cast %22 : vector<16xf32> to vector<16x1xf32>
    %24 = vector.broadcast %23 : vector<16x1xf32> to vector<16x16xf32>
    %25 = arith.subf %21, %24 : vector<16x16xf32>
    %26 = math.exp %25 : vector<16x16xf32>
    %27 = vector.broadcast %3 : vector<1x16xf32> to vector<16x16xf32>
    %28 = arith.mulf %26, %27 : vector<16x16xf32>
    %cst_19 = arith.constant dense<0.000000e+00> : vector<16xf32>
    %29 = vector.multi_reduction <add>, %28, %cst_19 [1] : vector<16x16xf32> to vector<16xf32>
    %30 = vector.shape_cast %29 : vector<16xf32> to vector<16x1xf32>
    %31 = tpu.reciprocal %30 {approx = true} : vector<16x1xf32> -> vector<16x1xf32>
    %32 = vector.broadcast %31 : vector<16x1xf32> to vector<16x16xf32>
    %33 = arith.mulf %28, %32 : vector<16x16xf32>
    %34 = arith.truncf %33 : vector<16x16xf32> to vector<16x16xbf16>
    %cst_20 = arith.constant dense<0.000000e+00> : vector<16x128xf32>
    %35 = tpu.matmul %34, %1, %cst_20 {dimension_numbers = #tpu.dot_dimension_numbers<[1], [0], [0], [1], [0, 0, 1, 1], [], []>} : vector<16x16xbf16>, vector<16x128xbf16>, vector<16x128xf32> -> vector<16x128xf32>
    %cst_21 = arith.constant 3.000000e-01 : f32
    %36 = vector.broadcast %cst_21 : f32 to vector<1x128xf32>
    %37 = arith.mulf %36, %7 : vector<1x128xf32>
    %cst_22 = arith.constant 0.699999988 : f32
    %38 = vector.broadcast %cst_22 : f32 to vector<16x128xf32>
    %39 = arith.mulf %38, %35 : vector<16x128xf32>
    %40 = vector.broadcast %37 : vector<1x128xf32> to vector<16x128xf32>
    %41 = arith.addf %40, %39 : vector<16x128xf32>
    %42 = arith.extf %15 : vector<16x128xbf16> to vector<16x128xf32>
    %cst_23 = arith.constant 1.000000e+00 : f32
    %43 = vector.broadcast %cst_23 : f32 to vector<1x128xf32>
    %44 = arith.mulf %42, %42 : vector<16x128xf32>
    %cst_24 = arith.constant dense<0.000000e+00> : vector<1x16xf32>
    %45 = tpu.matmul %43, %44, %cst_24 {dimension_numbers = #tpu.dot_dimension_numbers<[1], [1], [0], [0], [0, 0, 1, 0], [], []>} : vector<1x128xf32>, vector<16x128xf32>, vector<1x16xf32> -> vector<1x16xf32>
    %46 = math.sqrt %45 : vector<1x16xf32>
    %47 = arith.mulf %41, %41 : vector<16x128xf32>
    %cst_25 = arith.constant dense<0.000000e+00> : vector<1x16xf32>
    %48 = tpu.matmul %43, %47, %cst_25 {dimension_numbers = #tpu.dot_dimension_numbers<[1], [1], [0], [0], [0, 0, 1, 0], [], []>} : vector<1x128xf32>, vector<16x128xf32>, vector<1x16xf32> -> vector<1x16xf32>
    %49 = math.sqrt %48 : vector<1x16xf32>
    %50 = arith.mulf %5, %5 : vector<1x128xf32>
    %cst_26 = arith.constant dense<0.000000e+00> : vector<1xf32>
    %51 = vector.multi_reduction <add>, %50, %cst_26 [1] : vector<1x128xf32> to vector<1xf32>
    %52 = vector.shape_cast %51 : vector<1xf32> to vector<1x1xf32>
    %53 = math.sqrt %52 : vector<1x1xf32>
    %54 = arith.mulf %42, %41 : vector<16x128xf32>
    %cst_27 = arith.constant dense<0.000000e+00> : vector<1x16xf32>
    %55 = tpu.matmul %43, %54, %cst_27 {dimension_numbers = #tpu.dot_dimension_numbers<[1], [1], [0], [0], [0, 0, 1, 0], [], []>} : vector<1x128xf32>, vector<16x128xf32>, vector<1x16xf32> -> vector<1x16xf32>
    %56 = arith.truncf %5 : vector<1x128xf32> to vector<1x128xbf16>
    %cst_28 = arith.constant dense<0.000000e+00> : vector<1x16xf32>
    %57 = tpu.matmul %56, %15, %cst_28 {dimension_numbers = #tpu.dot_dimension_numbers<[1], [1], [0], [0], [0, 0, 1, 0], [], []>} : vector<1x128xbf16>, vector<16x128xbf16>, vector<1x16xf32> -> vector<1x16xf32>
    %58 = arith.mulf %46, %49 : vector<1x16xf32>
    %cst_29 = arith.constant 9.99999993E-9 : f32
    %59 = vector.broadcast %cst_29 : f32 to vector<1x16xf32>
    %60 = arith.maximumf %58, %59 : vector<1x16xf32>
    %61 = tpu.reciprocal %60 {approx = true} : vector<1x16xf32> -> vector<1x16xf32>
    %62 = arith.mulf %55, %61 : vector<1x16xf32>
    %63 = vector.broadcast %53 : vector<1x1xf32> to vector<1x16xf32>
    %64 = arith.mulf %46, %63 : vector<1x16xf32>
    %cst_30 = arith.constant 9.99999993E-9 : f32
    %65 = vector.broadcast %cst_30 : f32 to vector<1x16xf32>
    %66 = arith.maximumf %64, %65 : vector<1x16xf32>
    %67 = tpu.reciprocal %66 {approx = true} : vector<1x16xf32> -> vector<1x16xf32>
    %68 = arith.mulf %57, %67 : vector<1x16xf32>
    %69 = tpu.concatenate %62, %68 in 0 : vector<1x16xf32>, vector<1x16xf32> -> vector<2x16xf32>
    %cst_31 = arith.constant 1.000000e+01 : f32
    %70 = vector.broadcast %cst_31 : f32 to vector<2x16xf32>
    %71 = arith.mulf %69, %70 : vector<2x16xf32>
    %72 = vector.shape_cast %71 : vector<2x16xf32> to vector<1x2x16xf32>
    %c0_32 = arith.constant 0 : index
    %c0_33 = arith.constant 0 : index
    %c0_34 = arith.constant 0 : index
    %73 = vector.load %arg6[%c0_32, %c0_33, %c0_34] : memref<1x2x16xf32, #tpu.memory_space<vmem>>, vector<1x2x16xf32>
    tpu.vector_store %arg6[%c0_32, %c0_33, %c0_34], %72 {strides = array<i32>} : memref<1x2x16xf32, #tpu.memory_space<vmem>>, vector<1x2x16xf32>,
    return
  }
  func.func @transform_0(%arg0: i32, %arg1: i32) -> (i32, i32, i32) {
    %c0_i32 = arith.constant 0 : i32
    %c0_i32_0 = arith.constant 0 : i32
    %c0_i32_1 = arith.constant 0 : i32
    return %arg0, %c0_i32, %c0_i32_0 : i32, i32, i32
  }
  func.func @transform_1(%arg0: i32, %arg1: i32) -> (i32, i32, i32) {
    %c0_i32 = arith.constant 0 : i32
    %c0_i32_0 = arith.constant 0 : i32
    %c0_i32_1 = arith.constant 0 : i32
    return %arg0, %c0_i32, %c0_i32_0 : i32, i32, i32
  }
  func.func @transform_2(%arg0: i32, %arg1: i32) -> (i32, i32, i32) {
    %c0_i32 = arith.constant 0 : i32
    %c0_i32_0 = arith.constant 0 : i32
    %c0_i32_1 = arith.constant 0 : i32
    return %arg0, %c0_i32, %c0_i32_0 : i32, i32, i32
  }
  func.func @transform_3(%arg0: i32, %arg1: i32) -> (i32, i32, i32) {
    %c0_i32 = arith.constant 0 : i32
    %c0_i32_0 = arith.constant 0 : i32
    %c0_i32_1 = arith.constant 0 : i32
    return %arg0, %c0_i32, %c0_i32_0 : i32, i32, i32
  }
  func.func @transform_4(%arg0: i32, %arg1: i32) -> (i32, i32, i32) {
    %c0_i32 = arith.constant 0 : i32
    %c0_i32_0 = arith.constant 0 : i32
    return %arg0, %c0_i32, %arg1 : i32, i32, i32
  }
}

</mosaic_0001>

<llo_original>
// kernel: sspnet_forward.11
$region0: #{sspnet_forward.11}
  #allocation0 [shape = 'u32[]', space=smem, size = 0x4, offset = 0x4, fixed_abs, tag = 'smem constant byte address 0x4 - core index']
  #allocation1 [shape = 'u32[72,128]{1,0:T(1,128)}', space=vmem, size = 0x9000, scoped, tag = 'internal scratch']
  %s0 = inlined_call_operand.vmem [shape: f32[128,192], index: 0, kind: input, shape index: {}]
  %s1 = inlined_call_operand.vmem [shape: f32[192,128], index: 1, kind: input, shape index: {}]
  %s2 = inlined_call_operand.vmem [shape: f32[1,128], index: 2, kind: input, shape index: {}]
  %s3 = inlined_call_operand.vmem [shape: f32[128,128], index: 3, kind: input, shape index: {}]
  %s4 = inlined_call_operand.vmem [shape: f32[1,128], index: 4, kind: input, shape index: {}]
  %s5 = inlined_call_operand.vmem [shape: bf16[128,128], index: 5, kind: output, shape index: {}]
  %s6 = sld [smem:[#allocation0]]
  $region30: #{sspnet_forward.11} parent=0
    _
  %s8 = ssub.s32 1, %s6
  %s9 = scalar_select 0, %s8, %s6
  // Predicated region
  $region2: #{sspnet_forward.11} parent=0 // pred_check
    _
  $region3: #{sspnet_forward.11} parent=0 // pred_check_branch
    %11 = sbr.rel (0) target = $region5
  $region4: #{sspnet_forward.11} parent=0 // pred_region
    _
  $region5: #{sspnet_forward.11} parent=0 // pred_fallthru
    _
  // Predicated region
  $region6: #{sspnet_forward.11} parent=0 // pred_check
    _
  $region7: #{sspnet_forward.11} parent=0 // pred_check_branch
    %13 = sbr.rel (0) target = $region9
  $region8: #{sspnet_forward.11} parent=0 // pred_region
    _
  $region9: #{sspnet_forward.11} parent=0 // pred_fallthru
    _
  // Predicated region
  $region10: #{sspnet_forward.11} parent=0 // pred_check
    _
  $region11: #{sspnet_forward.11} parent=0 // pred_check_branch
    %15 = sbr.rel (0) target = $region13
  $region12: #{sspnet_forward.11} parent=0 // pred_region
    _
  $region13: #{sspnet_forward.11} parent=0 // pred_fallthru
    _
  // Predicated region
  $region14: #{sspnet_forward.11} parent=0 // pred_check
    _
  $region15: #{sspnet_forward.11} parent=0 // pred_check_branch
    %17 = sbr.rel (0) target = $region17
  $region16: #{sspnet_forward.11} parent=0 // pred_region
    _
  $region17: #{sspnet_forward.11} parent=0 // pred_fallthru
    _
  // Predicated region
  $region18: #{sspnet_forward.11} parent=0 // pred_check
    _
  $region19: #{sspnet_forward.11} parent=0 // pred_check_branch
    %19 = sbr.rel (0) target = $region21
  $region20: #{sspnet_forward.11} parent=0 // pred_region
    _
  $region21: #{sspnet_forward.11} parent=0 // pred_fallthru
    _
  %v21 = vld [vmem:[%s0] sm:$0xff]
  %v22 = vld [vmem:[%s0 + $0x8] sm:$0xff]
  %v23 = vld [vmem:[%s0 + $0x10] sm:$0xff]
  %v24 = vld [vmem:[%s0 + $0x18] sm:$0xff]
  %v25 = vld [vmem:[%s0 + $0x20] sm:$0xff]
  %v26 = vld [vmem:[%s0 + $0x28] sm:$0xff]
  %v27 = vld [vmem:[%s0 + $0x30] sm:$0xff]
  %v28 = vld [vmem:[%s0 + $0x38] sm:$0xff]
  %v29 = vld [vmem:[%s0 + $0x40] sm:$0xff]
  %v30 = vld [vmem:[%s0 + $0x48] sm:$0xff]
  %v31 = vld [vmem:[%s0 + $0x50] sm:$0xff]
  %v32 = vld [vmem:[%s0 + $0x58] sm:$0xff]
  %v33 = vld [vmem:[%s0 + $0x60] sm:$0xff]
  %v34 = vld [vmem:[%s0 + $0x68] sm:$0xff]
  %v35 = vld [vmem:[%s0 + $0x70] sm:$0xff]
  %v36 = vld [vmem:[%s0 + $0x78] sm:$0xff]
  %v37 = vld [vmem:[%s0 + $0x80] sm:$0xff]
  %v38 = vld [vmem:[%s0 + $0x88] sm:$0xff]
  %v39 = vld [vmem:[%s0 + $0x90] sm:$0xff]
  %v40 = vld [vmem:[%s0 + $0x98] sm:$0xff]
  %v41 = vld [vmem:[%s0 + $0xa0] sm:$0xff]
  %v42 = vld [vmem:[%s0 + $0xa8] sm:$0xff]
  %v43 = vld [vmem:[%s0 + $0xb0] sm:$0xff]
  %v44 = vld [vmem:[%s0 + $0xb8] sm:$0xff]
  %v45 = vld [vmem:[%s0 + $0xc0] sm:$0xff]
  %v46 = vld [vmem:[%s0 + $0xc8] sm:$0xff]
  %v47 = vld [vmem:[%s0 + $0xd0] sm:$0xff]
  %v48 = vld [vmem:[%s0 + $0xd8] sm:$0xff]
  %v49 = vld [vmem:[%s0 + $0xe0] sm:$0xff]
  %v50 = vld [vmem:[%s0 + $0xe8] sm:$0xff]
  %v51 = vld [vmem:[%s0 + $0xf0] sm:$0xff]
  %v52 = vld [vmem:[%s0 + $0xf8] sm:$0xff]
  %v53 = vpack.c.bf16 %v23, %v21
  %v54 = vpack.c.bf16 %v24, %v22
  %v55 = vpack.c.bf16 %v27, %v25
  %v56 = vpack.c.bf16 %v28, %v26
  %v57 = vpack.c.bf16 %v31, %v29
  %v58 = vpack.c.bf16 %v32, %v30
  %v59 = vpack.c.bf16 %v35, %v33
  %v60 = vpack.c.bf16 %v36, %v34
  %v61 = vpack.c.bf16 %v39, %v37
  %v62 = vpack.c.bf16 %v40, %v38
  %v63 = vpack.c.bf16 %v43, %v41
  %v64 = vpack.c.bf16 %v44, %v42
  %v65 = vpack.c.bf16 %v47, %v45
  %v66 = vpack.c.bf16 %v48, %v46
  %v67 = vpack.c.bf16 %v51, %v49
  %v68 = vpack.c.bf16 %v52, %v50
  %v69 = vld [vmem:[%s1] sm:$0xff]
  %v70 = vld [vmem:[%s1 + $0x8] sm:$0xff]
  %v71 = vld [vmem:[%s1 + $0x10] sm:$0xff]
  %v72 = vld [vmem:[%s1 + $0x18] sm:$0xff]
  %v73 = vld [vmem:[%s1 + $0x20] sm:$0xff]
  %v74 = vld [vmem:[%s1 + $0x28] sm:$0xff]
  %v75 = vld [vmem:[%s1 + $0x30] sm:$0xff]
  %v76 = vld [vmem:[%s1 + $0x38] sm:$0xff]
  %v77 = vld [vmem:[%s1 + $0x40] sm:$0xff]
  %v78 = vld [vmem:[%s1 + $0x48] sm:$0xff]
  %v79 = vld [vmem:[%s1 + $0x50] sm:$0xff]
  %v80 = vld [vmem:[%s1 + $0x58] sm:$0xff]
  %v81 = vld [vmem:[%s1 + $0x60] sm:$0xff]
  %v82 = vld [vmem:[%s1 + $0x68] sm:$0xff]
  %v83 = vld [vmem:[%s1 + $0x70] sm:$0xff]
  %v84 = vld [vmem:[%s1 + $0x78] sm:$0xff]
  %v85 = vld [vmem:[%s1 + $0x80] sm:$0xff]
  %v86 = vld [vmem:[%s1 + $0x88] sm:$0xff]
  %v87 = vld [vmem:[%s1 + $0x90] sm:$0xff]
  %v88 = vld [vmem:[%s1 + $0x98] sm:$0xff]
  %v89 = vld [vmem:[%s1 + $0xa0] sm:$0xff]
  %v90 = vld [vmem:[%s1 + $0xa8] sm:$0xff]
  %v91 = vld [vmem:[%s1 + $0xb0] sm:$0xff]
  %v92 = vld [vmem:[%s1 + $0xb8] sm:$0xff]
  %v93 = vpack.c.bf16 %v70, %v69
  %v94 = vpack.c.bf16 %v72, %v71
  %v95 = vpack.c.bf16 %v74, %v73
  %v96 = vpack.c.bf16 %v76, %v75
  %v97 = vpack.c.bf16 %v78, %v77
  %v98 = vpack.c.bf16 %v80, %v79
  %v99 = vpack.c.bf16 %v82, %v81
  %v100 = vpack.c.bf16 %v84, %v83
  %v101 = vpack.c.bf16 %v86, %v85
  %v102 = vpack.c.bf16 %v88, %v87
  %v103 = vpack.c.bf16 %v90, %v89
  %v104 = vpack.c.bf16 %v92, %v91
  %v105 = vld [vmem:[%s2] sm:$0x1]
  %v107 = vperm.slane %v105, 0
  %vm109 = vcmask 523264
  %v111 = vsel %vm109, %v54, 0
  %v114 = vsel %vm109, %v56, 0
  %v117 = vsel %vm109, %v58, 0
  %v120 = vsel %vm109, %v60, 0
  %v123 = vsel %vm109, %v62, 0
  %v126 = vsel %vm109, %v64, 0
  %v129 = vsel %vm109, %v66, 0
  %v132 = vsel %vm109, %v68, 0
  %134 = vmatpush.bf16.msra.mxu0 %v100
  %135 = vmatpush.bf16.msra.mxu0 %v99
  %136 = vmatpush.bf16.msra.mxu0 %v98
  %137 = vmatpush.bf16.msra.mxu0 %v97
  %138 = vmatpush.bf16.msra.mxu0 %v96
  %139 = vmatpush.bf16.msra.mxu0 %v95
  %140 = vmatpush.bf16.msra.mxu0 %v94
  %141 = vmatpush.bf16.msra.mxu0 %v93
  %142 = vmatmul.bf16.gmra.mxu0 %v53
  %v143 = vpop.f32.mrf.mxu0
  %v144 = vadd.f32 %v107, %v143
  %v145 = vpop.f32.mrf.mxu0
  %v146 = vadd.f32 %v107, %v145
  %147 = vmatmul.bf16.gmra.mxu0 %v55
  %v148 = vpop.f32.mrf.mxu0
  %v149 = vadd.f32 %v107, %v148
  %v150 = vpop.f32.mrf.mxu0
  %v151 = vadd.f32 %v107, %v150
  %152 = vmatmul.bf16.gmra.mxu0 %v57
  %v153 = vpop.f32.mrf.mxu0
  %v154 = vadd.f32 %v107, %v153
  %v155 = vpop.f32.mrf.mxu0
  %v156 = vadd.f32 %v107, %v155
  %157 = vmatmul.bf16.gmra.mxu0 %v59
  %v158 = vpop.f32.mrf.mxu0
  %v159 = vadd.f32 %v107, %v158
  %v160 = vpop.f32.mrf.mxu0
  %v161 = vadd.f32 %v107, %v160
  %162 = vmatmul.bf16.gmra.mxu0 %v61
  %v163 = vpop.f32.mrf.mxu0
  %v164 = vadd.f32 %v107, %v163
  %v165 = vpop.f32.mrf.mxu0
  %v166 = vadd.f32 %v107, %v165
  %167 = vmatmul.bf16.gmra.mxu0 %v63
  %v168 = vpop.f32.mrf.mxu0
  %v169 = vadd.f32 %v107, %v168
  %v170 = vpop.f32.mrf.mxu0
  %v171 = vadd.f32 %v107, %v170
  %172 = vmatmul.bf16.gmra.mxu0 %v65
  %v173 = vpop.f32.mrf.mxu0
  %v174 = vadd.f32 %v107, %v173
  %v175 = vpop.f32.mrf.mxu0
  %v176 = vadd.f32 %v107, %v175
  %177 = vmatmul.bf16.gmra.mxu0 %v67
  %v178 = vpop.f32.mrf.mxu0
  %v179 = vadd.f32 %v107, %v178
  %v180 = vpop.f32.mrf.mxu0
  %v181 = vadd.f32 %v107, %v180
  %182 = vdwg.mxu0
  %183 = vmatpush.bf16.msra.mxu0 0
  %184 = vmatpush.bf16.msra.mxu0 0
  %185 = vmatpush.bf16.msra.mxu0 0
  %186 = vmatpush.bf16.msra.mxu0 0
  %187 = vmatpush.bf16.msra.mxu0 %v104
  %188 = vmatpush.bf16.msra.mxu0 %v103
  %189 = vmatpush.bf16.msra.mxu0 %v102
  %190 = vmatpush.bf16.msra.mxu0 %v101
  %191 = vmatmul.bf16.gmra.mxu0 %v111
  %v192 = vpop.f32.mrf.mxu0
  %v193 = vadd.f32 %v144, %v192
  %v194 = vpop.f32.mrf.mxu0
  %v195 = vadd.f32 %v146, %v194
  %196 = vmatmul.bf16.gmra.mxu0 %v114
  %v197 = vpop.f32.mrf.mxu0
  %v198 = vadd.f32 %v149, %v197
  %v199 = vpop.f32.mrf.mxu0
  %v200 = vadd.f32 %v151, %v199
  %201 = vmatmul.bf16.gmra.mxu0 %v117
  %v202 = vpop.f32.mrf.mxu0
  %v203 = vadd.f32 %v154, %v202
  %v204 = vpop.f32.mrf.mxu0
  %v205 = vadd.f32 %v156, %v204
  %206 = vmatmul.bf16.gmra.mxu0 %v120
  %v207 = vpop.f32.mrf.mxu0
  %v208 = vadd.f32 %v159, %v207
  %v209 = vpop.f32.mrf.mxu0
  %v210 = vadd.f32 %v161, %v209
  %211 = vmatmul.bf16.gmra.mxu0 %v123
  %v212 = vpop.f32.mrf.mxu0
  %v213 = vadd.f32 %v164, %v212
  %v214 = vpop.f32.mrf.mxu0
  %v215 = vadd.f32 %v166, %v214
  %216 = vmatmul.bf16.gmra.mxu0 %v126
  %v217 = vpop.f32.mrf.mxu0
  %v218 = vadd.f32 %v169, %v217
  %v219 = vpop.f32.mrf.mxu0
  %v220 = vadd.f32 %v171, %v219
  %221 = vmatmul.bf16.gmra.mxu0 %v129
  %v222 = vpop.f32.mrf.mxu0
  %v223 = vadd.f32 %v174, %v222
  %v224 = vpop.f32.mrf.mxu0
  %v225 = vadd.f32 %v176, %v224
  %226 = vmatmul.bf16.gmra.mxu0 %v132
  %v227 = vpop.f32.mrf.mxu0
  %v228 = vadd.f32 %v179, %v227
  %v229 = vpop.f32.mrf.mxu0
  %v230 = vadd.f32 %v181, %v229
  %231 = vdwg.mxu0
  %v232 = vmax.f32 %v193, 0.0
  %v233 = vmax.f32 %v195, 0.0
  %v234 = vmax.f32 %v198, 0.0
  %v235 = vmax.f32 %v200, 0.0
  %v236 = vmax.f32 %v203, 0.0
  %v237 = vmax.f32 %v205, 0.0
  %v238 = vmax.f32 %v208, 0.0
  %v239 = vmax.f32 %v210, 0.0
  %v240 = vmax.f32 %v213, 0.0
  %v241 = vmax.f32 %v215, 0.0
  %v242 = vmax.f32 %v218, 0.0
  %v243 = vmax.f32 %v220, 0.0
  %v244 = vmax.f32 %v223, 0.0
  %v245 = vmax.f32 %v225, 0.0
  %v246 = vmax.f32 %v228, 0.0
  %v247 = vmax.f32 %v230, 0.0
  %v248 = vpack.c.bf16 %v233, %v232
  %v249 = vpack.c.bf16 %v235, %v234
  %v250 = vpack.c.bf16 %v237, %v236
  %v251 = vpack.c.bf16 %v239, %v238
  %v252 = vpack.c.bf16 %v241, %v240
  %v253 = vpack.c.bf16 %v243, %v242
  %v254 = vpack.c.bf16 %v245, %v244
  %v255 = vpack.c.bf16 %v247, %v246
  %v256 = vld [vmem:[%s3] sm:$0xff]
  %v257 = vld [vmem:[%s3 + $0x8] sm:$0xff]
  %v258 = vld [vmem:[%s3 + $0x10] sm:$0xff]
  %v259 = vld [vmem:[%s3 + $0x18] sm:$0xff]
  %v260 = vld [vmem:[%s3 + $0x20] sm:$0xff]
  %v261 = vld [vmem:[%s3 + $0x28] sm:$0xff]
  %v262 = vld [vmem:[%s3 + $0x30] sm:$0xff]
  %v263 = vld [vmem:[%s3 + $0x38] sm:$0xff]
  %v264 = vld [vmem:[%s3 + $0x40] sm:$0xff]
  %v265 = vld [vmem:[%s3 + $0x48] sm:$0xff]
  %v266 = vld [vmem:[%s3 + $0x50] sm:$0xff]
  %v267 = vld [vmem:[%s3 + $0x58] sm:$0xff]
  %v268 = vld [vmem:[%s3 + $0x60] sm:$0xff]
  %v269 = vld [vmem:[%s3 + $0x68] sm:$0xff]
  %v270 = vld [vmem:[%s3 + $0x70] sm:$0xff]
  %v271 = vld [vmem:[%s3 + $0x78] sm:$0xff]
  %v272 = vpack.c.bf16 %v257, %v256
  %v273 = vpack.c.bf16 %v259, %v258
  %v274 = vpack.c.bf16 %v261, %v260
  %v275 = vpack.c.bf16 %v263, %v262
  %v276 = vpack.c.bf16 %v265, %v264
  %v277 = vpack.c.bf16 %v267, %v266
  %v278 = vpack.c.bf16 %v269, %v268
  %v279 = vpack.c.bf16 %v271, %v270
  %v280 = vld [vmem:[%s4] sm:$0x1]
  %v282 = vperm.slane %v280, 0
  %284 = vmatpush.bf16.msra.mxu0 %v279
  %285 = vmatpush.bf16.msra.mxu0 %v278
  %286 = vmatpush.bf16.msra.mxu0 %v277
  %287 = vmatpush.bf16.msra.mxu0 %v276
  %288 = vmatpush.bf16.msra.mxu0 %v275
  %289 = vmatpush.bf16.msra.mxu0 %v274
  %290 = vmatpush.bf16.msra.mxu0 %v273
  %291 = vmatpush.bf16.msra.mxu0 %v272
  %292 = vmatmul.bf16.gmra.mxu0 %v248
  %v293 = vpop.f32.mrf.mxu0
  %v294 = vadd.f32 %v282, %v293
  %v295 = vpop.f32.mrf.mxu0
  %v296 = vadd.f32 %v282, %v295
  %297 = vmatmul.bf16.gmra.mxu0 %v249
  %v298 = vpop.f32.mrf.mxu0
  %v299 = vadd.f32 %v282, %v298
  %v300 = vpop.f32.mrf.mxu0
  %v301 = vadd.f32 %v282, %v300
  %302 = vmatmul.bf16.gmra.mxu0 %v250
  %v303 = vpop.f32.mrf.mxu0
  %v304 = vadd.f32 %v282, %v303
  %v305 = vpop.f32.mrf.mxu0
  %v306 = vadd.f32 %v282, %v305
  %307 = vmatmul.bf16.gmra.mxu0 %v251
  %v308 = vpop.f32.mrf.mxu0
  %v309 = vadd.f32 %v282, %v308
  %v310 = vpop.f32.mrf.mxu0
  %v311 = vadd.f32 %v282, %v310
  %312 = vmatmul.bf16.gmra.mxu0 %v252
  %v313 = vpop.f32.mrf.mxu0
  %v314 = vadd.f32 %v282, %v313
  %v315 = vpop.f32.mrf.mxu0
  %v316 = vadd.f32 %v282, %v315
  %317 = vmatmul.bf16.gmra.mxu0 %v253
  %v318 = vpop.f32.mrf.mxu0
  %v319 = vadd.f32 %v282, %v318
  %v320 = vpop.f32.mrf.mxu0
  %v321 = vadd.f32 %v282, %v320
  %322 = vmatmul.bf16.gmra.mxu0 %v254
  %v323 = vpop.f32.mrf.mxu0
  %v324 = vadd.f32 %v282, %v323
  %v325 = vpop.f32.mrf.mxu0
  %v326 = vadd.f32 %v282, %v325
  %327 = vmatmul.bf16.gmra.mxu0 %v255
  %v328 = vpop.f32.mrf.mxu0
  %v329 = vadd.f32 %v282, %v328
  %v330 = vpop.f32.mrf.mxu0
  %v331 = vadd.f32 %v282, %v330
  %332 = vdwg.mxu0
  %v333 = vmax.f32 %v294, 0.0
  %v334 = vmax.f32 %v296, 0.0
  %v335 = vmax.f32 %v299, 0.0
  %v336 = vmax.f32 %v301, 0.0
  %v337 = vmax.f32 %v304, 0.0
  %v338 = vmax.f32 %v306, 0.0
  %v339 = vmax.f32 %v309, 0.0
  %v340 = vmax.f32 %v311, 0.0
  %v341 = vmax.f32 %v314, 0.0
  %v342 = vmax.f32 %v316, 0.0
  %v343 = vmax.f32 %v319, 0.0
  %v344 = vmax.f32 %v321, 0.0
  %v345 = vmax.f32 %v324, 0.0
  %v346 = vmax.f32 %v326, 0.0
  %v347 = vmax.f32 %v329, 0.0
  %v348 = vmax.f32 %v331, 0.0
  %v349 = vpack.c.bf16 %v333, %v333
  %v350 = vpack.c.bf16 %v334, %v334
  %v351 = vpack.c.bf16 %v335, %v335
  %v352 = vpack.c.bf16 %v336, %v336
  %v353 = vpack.c.bf16 %v337, %v337
  %v354 = vpack.c.bf16 %v338, %v338
  %v355 = vpack.c.bf16 %v339, %v339
  %v356 = vpack.c.bf16 %v340, %v340
  %v357 = vpack.c.bf16 %v341, %v341
  %v358 = vpack.c.bf16 %v342, %v342
  %v359 = vpack.c.bf16 %v343, %v343
  %v360 = vpack.c.bf16 %v344, %v344
  %v361 = vpack.c.bf16 %v345, %v345
  %v362 = vpack.c.bf16 %v346, %v346
  %v363 = vpack.c.bf16 %v347, %v347
  %v364 = vpack.c.bf16 %v348, %v348
  %365 = vst [vmem:[%s5] sm:$0xf] %v349
  %366 = vst [vmem:[%s5 + $0x4] sm:$0xf] %v350
  %367 = vst [vmem:[%s5 + $0x8] sm:$0xf] %v351
  %368 = vst [vmem:[%s5 + $0xc] sm:$0xf] %v352
  %369 = vst [vmem:[%s5 + $0x10] sm:$0xf] %v353
  %370 = vst [vmem:[%s5 + $0x14] sm:$0xf] %v354
  %371 = vst [vmem:[%s5 + $0x18] sm:$0xf] %v355
  %372 = vst [vmem:[%s5 + $0x1c] sm:$0xf] %v356
  %373 = vst [vmem:[%s5 + $0x20] sm:$0xf] %v357
  %374 = vst [vmem:[%s5 + $0x24] sm:$0xf] %v358
  %375 = vst [vmem:[%s5 + $0x28] sm:$0xf] %v359
  %376 = vst [vmem:[%s5 + $0x2c] sm:$0xf] %v360
  %377 = vst [vmem:[%s5 + $0x30] sm:$0xf] %v361
  %378 = vst [vmem:[%s5 + $0x34] sm:$0xf] %v362
  %379 = vst [vmem:[%s5 + $0x38] sm:$0xf] %v363
  %380 = vst [vmem:[%s5 + $0x3c] sm:$0xf] %v364
  // Predicated region
  $region22: #{sspnet_forward.11} parent=0 // pred_check
    _
  $region23: #{sspnet_forward.11} parent=0 // pred_check_branch
    %382 = sbr.rel (0) target = $region25
  $region24: #{sspnet_forward.11} parent=0 // pred_region
    _
  $region25: #{sspnet_forward.11} parent=0 // pred_fallthru
    _
  // Predicated region
  $region26: #{sspnet_forward.11} parent=0 // pred_check
    _
  $region27: #{sspnet_forward.11} parent=0 // pred_check_branch
    %384 = sbr.rel (0) target = $region29
  $region28: #{sspnet_forward.11} parent=0 // pred_region
    _
  $region29: #{sspnet_forward.11} parent=0 // pred_fallthru
    _

// kernel: sspnet_forward.12
$region0: #{sspnet_forward.12}
  #allocation0 [shape = 'u32[]', space=smem, size = 0x4, offset = 0x4, fixed_abs, tag = 'smem constant byte address 0x4 - core index']
  #allocation1 [shape = 'u32[72,128]{1,0:T(1,128)}', space=vmem, size = 0x9000, scoped, tag = 'internal scratch']
  %s0 = inlined_call_operand.vmem [shape: bf16[32,512], index: 0, kind: input, shape index: {}]
  %s1 = inlined_call_operand.vmem [shape: f32[512,128], index: 1, kind: input, shape index: {}]
  %s2 = inlined_call_operand.vmem [shape: f32[1,128], index: 2, kind: input, shape index: {}]
  %s3 = inlined_call_operand.vmem [shape: f32[128,128], index: 3, kind: input, shape index: {}]
  %s4 = inlined_call_operand.vmem [shape: f32[1,128], index: 4, kind: input, shape index: {}]
  %s5 = inlined_call_operand.vmem [shape: bf16[32,128], index: 5, kind: output, shape index: {}]
  %s6 = sld [smem:[#allocation0]]
  $region30: #{sspnet_forward.12} parent=0
    _
  %s8 = ssub.s32 1, %s6
  %s9 = scalar_select 0, %s8, %s6
  // Predicated region
  $region2: #{sspnet_forward.12} parent=0 // pred_check
    _
  $region3: #{sspnet_forward.12} parent=0 // pred_check_branch
    %11 = sbr.rel (0) target = $region5
  $region4: #{sspnet_forward.12} parent=0 // pred_region
    _
  $region5: #{sspnet_forward.12} parent=0 // pred_fallthru
    _
  // Predicated region
  $region6: #{sspnet_forward.12} parent=0 // pred_check
    _
  $region7: #{sspnet_forward.12} parent=0 // pred_check_branch
    %13 = sbr.rel (0) target = $region9
  $region8: #{sspnet_forward.12} parent=0 // pred_region
    _
  $region9: #{sspnet_forward.12} parent=0 // pred_fallthru
    _
  // Predicated region
  $region10: #{sspnet_forward.12} parent=0 // pred_check
    _
  $region11: #{sspnet_forward.12} parent=0 // pred_check_branch
    %15 = sbr.rel (0) target = $region13
  $region12: #{sspnet_forward.12} parent=0 // pred_region
    _
  $region13: #{sspnet_forward.12} parent=0 // pred_fallthru
    _
  // Predicated region
  $region14: #{sspnet_forward.12} parent=0 // pred_check
    _
  $region15: #{sspnet_forward.12} parent=0 // pred_check_branch
    %17 = sbr.rel (0) target = $region17
  $region16: #{sspnet_forward.12} parent=0 // pred_region
    _
  $region17: #{sspnet_forward.12} parent=0 // pred_fallthru
    _
  // Predicated region
  $region18: #{sspnet_forward.12} parent=0 // pred_check
    _
  $region19: #{sspnet_forward.12} parent=0 // pred_check_branch
    %19 = sbr.rel (0) target = $region21
  $region20: #{sspnet_forward.12} parent=0 // pred_region
    _
  $region21: #{sspnet_forward.12} parent=0 // pred_fallthru
    _
  %v20 = vld [vmem:[%s0] sm:$0xff]
  %v21 = vld [vmem:[%s0 + $0x8] sm:$0xff]
  %v22 = vld [vmem:[%s0 + $0x10] sm:$0xff]
  %v23 = vld [vmem:[%s0 + $0x18] sm:$0xff]
  %v24 = vld [vmem:[%s0 + $0x20] sm:$0xff]
  %v25 = vld [vmem:[%s0 + $0x28] sm:$0xff]
  %v26 = vld [vmem:[%s0 + $0x30] sm:$0xff]
  %v27 = vld [vmem:[%s0 + $0x38] sm:$0xff]
  %v28 = vld [vmem:[%s1] sm:$0xff]
  %v29 = vld [vmem:[%s1 + $0x8] sm:$0xff]
  %v30 = vld [vmem:[%s1 + $0x10] sm:$0xff]
  %v31 = vld [vmem:[%s1 + $0x18] sm:$0xff]
  %v32 = vld [vmem:[%s1 + $0x20] sm:$0xff]
  %v33 = vld [vmem:[%s1 + $0x28] sm:$0xff]
  %v34 = vld [vmem:[%s1 + $0x30] sm:$0xff]
  %v35 = vld [vmem:[%s1 + $0x38] sm:$0xff]
  %v36 = vld [vmem:[%s1 + $0x40] sm:$0xff]
  %v37 = vld [vmem:[%s1 + $0x48] sm:$0xff]
  %v38 = vld [vmem:[%s1 + $0x50] sm:$0xff]
  %v39 = vld [vmem:[%s1 + $0x58] sm:$0xff]
  %v40 = vld [vmem:[%s1 + $0x60] sm:$0xff]
  %v41 = vld [vmem:[%s1 + $0x68] sm:$0xff]
  %v42 = vld [vmem:[%s1 + $0x70] sm:$0xff]
  %v43 = vld [vmem:[%s1 + $0x78] sm:$0xff]
  %v44 = vld [vmem:[%s1 + $0x80] sm:$0xff]
  %v45 = vld [vmem:[%s1 + $0x88] sm:$0xff]
  %v46 = vld [vmem:[%s1 + $0x90] sm:$0xff]
  %v47 = vld [vmem:[%s1 + $0x98] sm:$0xff]
  %v48 = vld [vmem:[%s1 + $0xa0] sm:$0xff]
  %v49 = vld [vmem:[%s1 + $0xa8] sm:$0xff]
  %v50 = vld [vmem:[%s1 + $0xb0] sm:$0xff]
  %v51 = vld [vmem:[%s1 + $0xb8] sm:$0xff]
  %v52 = vld [vmem:[%s1 + $0xc0] sm:$0xff]
  %v53 = vld [vmem:[%s1 + $0xc8] sm:$0xff]
  %v54 = vld [vmem:[%s1 + $0xd0] sm:$0xff]
  %v55 = vld [vmem:[%s1 + $0xd8] sm:$0xff]
  %v56 = vld [vmem:[%s1 + $0xe0] sm:$0xff]
  %v57 = vld [vmem:[%s1 + $0xe8] sm:$0xff]
  %v58 = vld [vmem:[%s1 + $0xf0] sm:$0xff]
  %v59 = vld [vmem:[%s1 + $0xf8] sm:$0xff]
  %v60 = vld [vmem:[%s1 + $0x100] sm:$0xff]
  %v61 = vld [vmem:[%s1 + $0x108] sm:$0xff]
  %v62 = vld [vmem:[%s1 + $0x110] sm:$0xff]
  %v63 = vld [vmem:[%s1 + $0x118] sm:$0xff]
  %v64 = vld [vmem:[%s1 + $0x120] sm:$0xff]
  %v65 = vld [vmem:[%s1 + $0x128] sm:$0xff]
  %v66 = vld [vmem:[%s1 + $0x130] sm:$0xff]
  %v67 = vld [vmem:[%s1 + $0x138] sm:$0xff]
  %v68 = vld [vmem:[%s1 + $0x140] sm:$0xff]
  %v69 = vld [vmem:[%s1 + $0x148] sm:$0xff]
  %v70 = vld [vmem:[%s1 + $0x150] sm:$0xff]
  %v71 = vld [vmem:[%s1 + $0x158] sm:$0xff]
  %v72 = vld [vmem:[%s1 + $0x160] sm:$0xff]
  %v73 = vld [vmem:[%s1 + $0x168] sm:$0xff]
  %v74 = vld [vmem:[%s1 + $0x170] sm:$0xff]
  %v75 = vld [vmem:[%s1 + $0x178] sm:$0xff]
  %v76 = vld [vmem:[%s1 + $0x180] sm:$0xff]
  %v77 = vld [vmem:[%s1 + $0x188] sm:$0xff]
  %v78 = vld [vmem:[%s1 + $0x190] sm:$0xff]
  %v79 = vld [vmem:[%s1 + $0x198] sm:$0xff]
  %v80 = vld [vmem:[%s1 + $0x1a0] sm:$0xff]
  %v81 = vld [vmem:[%s1 + $0x1a8] sm:$0xff]
  %v82 = vld [vmem:[%s1 + $0x1b0] sm:$0xff]
  %v83 = vld [vmem:[%s1 + $0x1b8] sm:$0xff]
  %v84 = vld [vmem:[%s1 + $0x1c0] sm:$0xff]
  %v85 = vld [vmem:[%s1 + $0x1c8] sm:$0xff]
  %v86 = vld [vmem:[%s1 + $0x1d0] sm:$0xff]
  %v87 = vld [vmem:[%s1 + $0x1d8] sm:$0xff]
  %v88 = vld [vmem:[%s1 + $0x1e0] sm:$0xff]
  %v89 = vld [vmem:[%s1 + $0x1e8] sm:$0xff]
  %v90 = vld [vmem:[%s1 + $0x1f0] sm:$0xff]
  %v91 = vld [vmem:[%s1 + $0x1f8] sm:$0xff]
  %v92 = vpack.c.bf16 %v29, %v28
  %v93 = vpack.c.bf16 %v31, %v30
  %v94 = vpack.c.bf16 %v33, %v32
  %v95 = vpack.c.bf16 %v35, %v34
  %v96 = vpack.c.bf16 %v37, %v36
  %v97 = vpack.c.bf16 %v39, %v38
  %v98 = vpack.c.bf16 %v41, %v40
  %v99 = vpack.c.bf16 %v43, %v42
  %v100 = vpack.c.bf16 %v45, %v44
  %v101 = vpack.c.bf16 %v47, %v46
  %v102 = vpack.c.bf16 %v49, %v48
  %v103 = vpack.c.bf16 %v51, %v50
  %v104 = vpack.c.bf16 %v53, %v52
  %v105 = vpack.c.bf16 %v55, %v54
  %v106 = vpack.c.bf16 %v57, %v56
  %v107 = vpack.c.bf16 %v59, %v58
  %v108 = vpack.c.bf16 %v61, %v60
  %v109 = vpack.c.bf16 %v63, %v62
  %v110 = vpack.c.bf16 %v65, %v64
  %v111 = vpack.c.bf16 %v67, %v66
  %v112 = vpack.c.bf16 %v69, %v68
  %v113 = vpack.c.bf16 %v71, %v70
  %v114 = vpack.c.bf16 %v73, %v72
  %v115 = vpack.c.bf16 %v75, %v74
  %v116 = vpack.c.bf16 %v77, %v76
  %v117 = vpack.c.bf16 %v79, %v78
  %v118 = vpack.c.bf16 %v81, %v80
  %v119 = vpack.c.bf16 %v83, %v82
  %v120 = vpack.c.bf16 %v85, %v84
  %v121 = vpack.c.bf16 %v87, %v86
  %v122 = vpack.c.bf16 %v89, %v88
  %v123 = vpack.c.bf16 %v91, %v90
  %v124 = vld [vmem:[%s2] sm:$0x1]
  %v126 = vperm.slane %v124, 0
  %v136 = vunpack.c.l.b16 %v20
  %v137 = vunpack.c.h.b16 %v20
  %v138 = vunpack.c.l.b16 %v21
  %v139 = vunpack.c.h.b16 %v21
  %v140 = vunpack.c.l.b16 %v22
  %v141 = vunpack.c.h.b16 %v22
  %v142 = vunpack.c.l.b16 %v23
  %v143 = vunpack.c.h.b16 %v23
  %v144 = vunpack.c.l.b16 %v24
  %v145 = vunpack.c.h.b16 %v24
  %v146 = vunpack.c.l.b16 %v25
  %v147 = vunpack.c.h.b16 %v25
  %v148 = vunpack.c.l.b16 %v26
  %v149 = vunpack.c.h.b16 %v26
  %v150 = vunpack.c.l.b16 %v27
  %v151 = vunpack.c.h.b16 %v27
  %v152 = vpack.c.b16 %v140, %v136
  %v153 = vpack.c.b16 %v141, %v137
  %v154 = vpack.c.b16 %v142, %v138
  %v155 = vpack.c.b16 %v143, %v139
  %v156 = vpack.c.b16 %v148, %v144
  %v157 = vpack.c.b16 %v149, %v145
  %v158 = vpack.c.b16 %v150, %v146
  %v159 = vpack.c.b16 %v151, %v147
  %168 = vmatpush.bf16.msra.mxu0 %v99
  %169 = vmatpush.bf16.msra.mxu0 %v98
  %170 = vmatpush.bf16.msra.mxu0 %v97
  %171 = vmatpush.bf16.msra.mxu0 %v96
  %172 = vmatpush.bf16.msra.mxu0 %v95
  %173 = vmatpush.bf16.msra.mxu0 %v94
  %174 = vmatpush.bf16.msra.mxu0 %v93
  %175 = vmatpush.bf16.msra.mxu0 %v92
  %176 = vmatmul.bf16.gmra.mxu0 %v152
  %v177 = vpop.f32.mrf.mxu0
  %v178 = vadd.f32 %v126, %v177
  %v179 = vpop.f32.mrf.mxu0
  %v180 = vadd.f32 %v126, %v179
  %181 = vmatmul.bf16.gmra.mxu0 %v156
  %v182 = vpop.f32.mrf.mxu0
  %v183 = vadd.f32 %v126, %v182
  %v184 = vpop.f32.mrf.mxu0
  %v185 = vadd.f32 %v126, %v184
  %186 = vdwg.mxu0
  %187 = vmatpush.bf16.msra.mxu0 %v107
  %188 = vmatpush.bf16.msra.mxu0 %v106
  %189 = vmatpush.bf16.msra.mxu0 %v105
  %190 = vmatpush.bf16.msra.mxu0 %v104
  %191 = vmatpush.bf16.msra.mxu0 %v103
  %192 = vmatpush.bf16.msra.mxu0 %v102
  %193 = vmatpush.bf16.msra.mxu0 %v101
  %194 = vmatpush.bf16.msra.mxu0 %v100
  %195 = vmatmul.bf16.gmra.mxu0 %v153
  %v196 = vpop.f32.mrf.mxu0
  %v197 = vadd.f32 %v178, %v196
  %v198 = vpop.f32.mrf.mxu0
  %v199 = vadd.f32 %v180, %v198
  %200 = vmatmul.bf16.gmra.mxu0 %v157
  %v201 = vpop.f32.mrf.mxu0
  %v202 = vadd.f32 %v183, %v201
  %v203 = vpop.f32.mrf.mxu0
  %v204 = vadd.f32 %v185, %v203
  %205 = vdwg.mxu0
  %206 = vmatpush.bf16.msra.mxu0 %v115
  %207 = vmatpush.bf16.msra.mxu0 %v114
  %208 = vmatpush.bf16.msra.mxu0 %v113
  %209 = vmatpush.bf16.msra.mxu0 %v112
  %210 = vmatpush.bf16.msra.mxu0 %v111
  %211 = vmatpush.bf16.msra.mxu0 %v110
  %212 = vmatpush.bf16.msra.mxu0 %v109
  %213 = vmatpush.bf16.msra.mxu0 %v108
  %214 = vmatmul.bf16.gmra.mxu0 %v154
  %v215 = vpop.f32.mrf.mxu0
  %v216 = vadd.f32 %v197, %v215
  %v217 = vpop.f32.mrf.mxu0
  %v218 = vadd.f32 %v199, %v217
  %219 = vmatmul.bf16.gmra.mxu0 %v158
  %v220 = vpop.f32.mrf.mxu0
  %v221 = vadd.f32 %v202, %v220
  %v222 = vpop.f32.mrf.mxu0
  %v223 = vadd.f32 %v204, %v222
  %224 = vdwg.mxu0
  %225 = vmatpush.bf16.msra.mxu0 %v123
  %226 = vmatpush.bf16.msra.mxu0 %v122
  %227 = vmatpush.bf16.msra.mxu0 %v121
  %228 = vmatpush.bf16.msra.mxu0 %v120
  %229 = vmatpush.bf16.msra.mxu0 %v119
  %230 = vmatpush.bf16.msra.mxu0 %v118
  %231 = vmatpush.bf16.msra.mxu0 %v117
  %232 = vmatpush.bf16.msra.mxu0 %v116
  %233 = vmatmul.bf16.gmra.mxu0 %v155
  %v234 = vpop.f32.mrf.mxu0
  %v235 = vadd.f32 %v216, %v234
  %v236 = vpop.f32.mrf.mxu0
  %v237 = vadd.f32 %v218, %v236
  %238 = vmatmul.bf16.gmra.mxu0 %v159
  %v239 = vpop.f32.mrf.mxu0
  %v240 = vadd.f32 %v221, %v239
  %v241 = vpop.f32.mrf.mxu0
  %v242 = vadd.f32 %v223, %v241
  %243 = vdwg.mxu0
  %v244 = vmax.f32 %v235, 0.0
  %v245 = vmax.f32 %v237, 0.0
  %v246 = vmax.f32 %v240, 0.0
  %v247 = vmax.f32 %v242, 0.0
  %v248 = vpack.c.bf16 %v245, %v244
  %v249 = vpack.c.bf16 %v247, %v246
  %v250 = vld [vmem:[%s3] sm:$0xff]
  %v251 = vld [vmem:[%s3 + $0x8] sm:$0xff]
  %v252 = vld [vmem:[%s3 + $0x10] sm:$0xff]
  %v253 = vld [vmem:[%s3 + $0x18] sm:$0xff]
  %v254 = vld [vmem:[%s3 + $0x20] sm:$0xff]
  %v255 = vld [vmem:[%s3 + $0x28] sm:$0xff]
  %v256 = vld [vmem:[%s3 + $0x30] sm:$0xff]
  %v257 = vld [vmem:[%s3 + $0x38] sm:$0xff]
  %v258 = vld [vmem:[%s3 + $0x40] sm:$0xff]
  %v259 = vld [vmem:[%s3 + $0x48] sm:$0xff]
  %v260 = vld [vmem:[%s3 + $0x50] sm:$0xff]
  %v261 = vld [vmem:[%s3 + $0x58] sm:$0xff]
  %v262 = vld [vmem:[%s3 + $0x60] sm:$0xff]
  %v263 = vld [vmem:[%s3 + $0x68] sm:$0xff]
  %v264 = vld [vmem:[%s3 + $0x70] sm:$0xff]
  %v265 = vld [vmem:[%s3 + $0x78] sm:$0xff]
  %v266 = vpack.c.bf16 %v251, %v250
  %v267 = vpack.c.bf16 %v253, %v252
  %v268 = vpack.c.bf16 %v255, %v254
  %v269 = vpack.c.bf16 %v257, %v256
  %v270 = vpack.c.bf16 %v259, %v258
  %v271 = vpack.c.bf16 %v261, %v260
  %v272 = vpack.c.bf16 %v263, %v262
  %v273 = vpack.c.bf16 %v265, %v264
  %v274 = vld [vmem:[%s4] sm:$0x1]
  %v276 = vperm.slane %v274, 0
  %278 = vmatpush.bf16.msra.mxu0 %v273
  %279 = vmatpush.bf16.msra.mxu0 %v272
  %280 = vmatpush.bf16.msra.mxu0 %v271
  %281 = vmatpush.bf16.msra.mxu0 %v270
  %282 = vmatpush.bf16.msra.mxu0 %v269
  %283 = vmatpush.bf16.msra.mxu0 %v268
  %284 = vmatpush.bf16.msra.mxu0 %v267
  %285 = vmatpush.bf16.msra.mxu0 %v266
  %286 = vmatmul.bf16.gmra.mxu0 %v248
  %v287 = vpop.f32.mrf.mxu0
  %v288 = vadd.f32 %v276, %v287
  %v289 = vpop.f32.mrf.mxu0
  %v290 = vadd.f32 %v276, %v289
  %291 = vmatmul.bf16.gmra.mxu0 %v249
  %v292 = vpop.f32.mrf.mxu0
  %v293 = vadd.f32 %v276, %v292
  %v294 = vpop.f32.mrf.mxu0
  %v295 = vadd.f32 %v276, %v294
  %296 = vdwg.mxu0
  %v297 = vmax.f32 %v288, 0.0
  %v298 = vmax.f32 %v290, 0.0
  %v299 = vmax.f32 %v293, 0.0
  %v300 = vmax.f32 %v295, 0.0
  %v301 = vpack.c.bf16 %v297, %v297
  %v302 = vpack.c.bf16 %v298, %v298
  %v303 = vpack.c.bf16 %v299, %v299
  %v304 = vpack.c.bf16 %v300, %v300
  %305 = vst [vmem:[%s5] sm:$0xf] %v301
  %306 = vst [vmem:[%s5 + $0x4] sm:$0xf] %v302
  %307 = vst [vmem:[%s5 + $0x8] sm:$0xf] %v303
  %308 = vst [vmem:[%s5 + $0xc] sm:$0xf] %v304
  // Predicated region
  $region22: #{sspnet_forward.12} parent=0 // pred_check
    _
  $region23: #{sspnet_forward.12} parent=0 // pred_check_branch
    %310 = sbr.rel (0) target = $region25
  $region24: #{sspnet_forward.12} parent=0 // pred_region
    _
  $region25: #{sspnet_forward.12} parent=0 // pred_fallthru
    _
  // Predicated region
  $region26: #{sspnet_forward.12} parent=0 // pred_check
    _
  $region27: #{sspnet_forward.12} parent=0 // pred_check_branch
    %312 = sbr.rel (0) target = $region29
  $region28: #{sspnet_forward.12} parent=0 // pred_region
    _
  $region29: #{sspnet_forward.12} parent=0 // pred_fallthru
    _

// kernel: sspnet_forward.17
$region0: #{sspnet_forward.17}
  #allocation0 [shape = 'u32[]', space=smem, size = 0x4, offset = 0x4, fixed_abs, tag = 'smem constant byte address 0x4 - core index']
  #allocation1 [shape = 'u32[72,128]{1,0:T(1,128)}', space=vmem, size = 0x9000, scoped, tag = 'internal scratch']
  %s0 = inlined_call_operand.vmem [shape: bf16[2,16,128], index: 0, kind: input, shape index: {}]
  %s1 = inlined_call_operand.vmem [shape: f32[2,2,16], index: 1, kind: input, shape index: {}]
  %s2 = inlined_call_operand.vmem [shape: f32[2,2,128], index: 2, kind: output, shape index: {}]
  %s3 = sld [smem:[#allocation0]]
  $region41: #{sspnet_forward.17} parent=0
    _
  %s5 = ssub.s32 1, %s3
  %s6 = scalar_select 0, %s5, %s3
  loop: start=0, step=1, limit=4
  $region2: #{sspnet_forward.17} parent=0 // loop_pre_header
    _
  $region3: #{sspnet_forward.17} parent=0 // loop_header
    %s8 = sphi 0, %s12
    %p9 = scmp.ge.s32.totalorder %s8, 4
    %s18 = sphi 0, %s20
    %s21 = sphi 0, %s18
    %s22 = sphi 0, %s21
    %s38 = sphi 0, %s22
    %s44 = sphi 0, %s46
    %s47 = sphi 0, %s44
    %s48 = sphi 0, %s47
    %s64 = sphi 0, %s48
    %s70 = sphi 0, %s72
    %s73 = sphi 0, %s70
    %s74 = sphi 0, %s73
    %s90 = sphi 0, %s74
  $region4: #{sspnet_forward.17} parent=0 // loop_header_branch
    %11 = sbr.rel (%p9) target = $region8
  $region5: #{sspnet_forward.17} parent=0 // loop_body
    %s13 = ssub.s32 %s8, 1
    %s14 = ssub.s32 %s8, 2
    %s15 = sadd.s32 %s8, 1
    %s16 = ssub.s32 %s8, %s15
    %p17 = scmp.eq.s32.totalorder %s16, 0
    %s19 = sadd.s32 %s18, 1
    %s20 = scalar_select %p17, %s18, %s19
    %p23 = pneg %p17
    %p24 = scmp.eq.s32.totalorder %s8, 1
    %p25 = por %p23, %p24
    %p26 = scmp.ne.s32.totalorder %s18, %s21
    %p27 = scmp.eq.s32.totalorder %s8, 0
    %p28 = por %p26, %p27
    %p29 = scmp.ne.s32.totalorder %s18, %s21
    %p30 = scmp.eq.s32.totalorder %s13, 1
    %p31 = por %p29, %p30
    %p32 = scmp.ne.s32.totalorder %s21, %s22
    %p33 = scmp.eq.s32.totalorder %s13, 0
    %p34 = por %p32, %p33
    %p35 = scmp.ne.s32.totalorder %s21, %s22
    %p36 = scmp.eq.s32.totalorder %s14, 1
    %p37 = por %p35, %p36
    %p39 = scmp.ne.s32.totalorder %s22, %s38
    %p40 = scmp.eq.s32.totalorder %s14, 0
    %p41 = por %p39, %p40
    %s42 = ssub.s32 %s8, %s15
    %p43 = scmp.eq.s32.totalorder %s42, 0
    %s45 = sadd.s32 %s44, 1
    %s46 = scalar_select %p43, %s44, %s45
    %p49 = pneg %p43
    %p50 = scmp.eq.s32.totalorder %s8, 1
    %p51 = por %p49, %p50
    %p52 = scmp.ne.s32.totalorder %s44, %s47
    %p53 = scmp.eq.s32.totalorder %s8, 0
    %p54 = por %p52, %p53
    %p55 = scmp.ne.s32.totalorder %s44, %s47
    %p56 = scmp.eq.s32.totalorder %s13, 1
    %p57 = por %p55, %p56
    %p58 = scmp.ne.s32.totalorder %s47, %s48
    %p59 = scmp.eq.s32.totalorder %s13, 0
    %p60 = por %p58, %p59
    %p61 = scmp.ne.s32.totalorder %s47, %s48
    %p62 = scmp.eq.s32.totalorder %s14, 1
    %p63 = por %p61, %p62
    %p65 = scmp.ne.s32.totalorder %s48, %s64
    %p66 = scmp.eq.s32.totalorder %s14, 0
    %p67 = por %p65, %p66
    %s68 = ssub.s32 %s8, %s15
    %p69 = scmp.eq.s32.totalorder %s68, 0
    %s71 = sadd.s32 %s70, 1
    %s72 = scalar_select %p69, %s70, %s71
    %p75 = pneg %p69
    %p76 = scmp.eq.s32.totalorder %s8, 1
    %p77 = por %p75, %p76
    %p78 = scmp.ne.s32.totalorder %s70, %s73
    %p79 = scmp.eq.s32.totalorder %s8, 0
    %p80 = por %p78, %p79
    %p81 = scmp.ne.s32.totalorder %s70, %s73
    %p82 = scmp.eq.s32.totalorder %s13, 1
    %p83 = por %p81, %p82
    %p84 = scmp.ne.s32.totalorder %s73, %s74
    %p85 = scmp.eq.s32.totalorder %s13, 0
    %p86 = por %p84, %p85
    %p87 = scmp.ne.s32.totalorder %s73, %s74
    %p88 = scmp.eq.s32.totalorder %s14, 1
    %p89 = por %p87, %p88
    %p91 = scmp.ne.s32.totalorder %s74, %s90
    %p92 = scmp.eq.s32.totalorder %s14, 0
    %p93 = por %p91, %p92
    %p94 = scmp.le.s32.totalorder 1, %s8
    %p95 = scmp.lt.s32.totalorder %s8, 3
    %p96 = pnand %p94, %p95
    %p97 = pneg %p96
    // Predicated region
    $region9: #{sspnet_forward.17} parent=5 // pred_check
      _
    $region10: #{sspnet_forward.17} parent=5 // pred_check_branch
      %99 = sbr.rel (%p96) target = $region12
    $region11: #{sspnet_forward.17} parent=5 // pred_region
      %s100 = ssub.s32 %s8, 1
    $region12: #{sspnet_forward.17} parent=5 // pred_fallthru
      _
    %p101 = scmp.lt.s32.totalorder %s8, 2
    // Predicated region
    $region13: #{sspnet_forward.17} parent=5 // pred_check
      %p102 = pneg %p101
    $region14: #{sspnet_forward.17} parent=5 // pred_check_branch
      %104 = sbr.rel (%p102) target = $region16
    $region15: #{sspnet_forward.17} parent=5 // pred_region
      // Predicated region
      $region17: #{sspnet_forward.17} parent=15 // pred_check
        %p105 = pneg %p28
      $region18: #{sspnet_forward.17} parent=15 // pred_check_branch
        %107 = sbr.rel (%p105) target = $region20
      $region19: #{sspnet_forward.17} parent=15 // pred_region
        %p108 = scmp.lt.s32.totalorder %s8, 1
        %s109 = scalar_select %p108, %s8, 1
        %s110 = smul.addr %s109, 2
        %s111 = smul.addr %s110, 4
        %s112 = scalar_lea.vmem %s0, %s111
      $region20: #{sspnet_forward.17} parent=15 // pred_fallthru
        _
      // Predicated region
      $region21: #{sspnet_forward.17} parent=15 // pred_check
        %p113 = pneg %p54
      $region22: #{sspnet_forward.17} parent=15 // pred_check_branch
        %115 = sbr.rel (%p113) target = $region24
      $region23: #{sspnet_forward.17} parent=15 // pred_region
        %p116 = scmp.lt.s32.totalorder %s8, 1
        %s117 = scalar_select %p116, %s8, 1
        %s118 = smul.addr %s117, 2
        %s119 = scalar_lea.vmem %s1, %s118
      $region24: #{sspnet_forward.17} parent=15 // pred_fallthru
        _
    $region16: #{sspnet_forward.17} parent=5 // pred_fallthru
      _
    %p120 = scmp.le.s32.totalorder 1, %s8
    %p121 = scmp.lt.s32.totalorder %s8, 3
    %p122 = pnand %p120, %p121
    %p123 = pneg %p122
    // Predicated region
    $region25: #{sspnet_forward.17} parent=5 // pred_check
      _
    $region26: #{sspnet_forward.17} parent=5 // pred_check_branch
      %125 = sbr.rel (%p122) target = $region28
    $region27: #{sspnet_forward.17} parent=5 // pred_region
      %s126 = ssub.s32 %s8, 1
      %p127 = scmp.lt.s32.totalorder %s13, 1
      %s128 = scalar_select %p127, %s13, 1
      %s129 = smul.addr %s128, 2
      %s130 = smul.addr %s129, 4
      %s131 = scalar_lea.vmem %s0, %s130
      %p132 = pneg %p34
      %p133 = pneg %p31
      %p134 = scmp.lt.s32.totalorder %s13, 1
      %s135 = scalar_select %p134, %s13, 1
      %s136 = smul.addr %s135, 2
      %s137 = scalar_lea.vmem %s1, %s136
      %p138 = pneg %p60
      %p139 = pneg %p57
      %p140 = pneg %p86
      %p141 = pneg %p83
      %p142 = scmp.lt.s32.totalorder %s13, 1
      %s143 = scalar_select %p142, %s13, 1
      %s144 = smul.addr %s143, 2
      %s145 = scalar_lea.vmem %s2, %s144
      %p146 = scmp.lt.s32.totalorder %s13, 1
      %s147 = scalar_select %p146, %s13, 1
      %s148 = smul.addr %s147, 2
      %s149 = smul.addr %s148, 4
      %s150 = scalar_lea.vmem %s0, %s149
      %p151 = scmp.lt.s32.totalorder %s13, 1
      %s152 = scalar_select %p151, %s13, 1
      %s153 = smul.addr %s152, 2
      %s154 = scalar_lea.vmem %s1, %s153
      %p155 = scmp.lt.s32.totalorder %s13, 1
      %s156 = scalar_select %p155, %s13, 1
      %s157 = smul.addr %s156, 2
      %s158 = scalar_lea.vmem %s2, %s157
      %v160 = vld [vmem:[%s150] sm:$0xf]
      %v161 = vld [vmem:[%s150 + $0x4] sm:$0xf]
      %v162 = vld [vmem:[%s154] sm:$0x3]
      %v163 = vpack.c.bf16 %v162, %v162
      %v166 = vunpack.c.l.b16 %v160
      %v167 = vunpack.c.l.b16 %v161
      %v168 = vpack.c.b16 %v167, %v166
      %vm170 = vcmask 130048
      %v172 = vsel %vm170, %v163, 0
      %174 = vmatpush.bf16.msra.mxu0 0
      %175 = vmatpush.bf16.msra.mxu0 0
      %176 = vmatpush.bf16.msra.mxu0 0
      %177 = vmatpush.bf16.msra.mxu0 0
      %178 = vmatpush.bf16.msra.mxu0 0
      %179 = vmatpush.bf16.msra.mxu0 0
      %180 = vmatpush.bf16.msra.mxu0 0
      %181 = vmatpush.bf16.msra.mxu0 %v168
      %182 = vmatmul.bf16.gmra.mxu0 %v172
      %v183 = vpop.f32.mrf.mxu0
      %v184 = vadd.f32 0.0, %v183
      %v185 = vpop.f32.mrf.mxu0
      %186 = vdwg.mxu0
      %vm187 = vcmask 123904
      %v188 = vsel %vm187, %v162, 0.0
      %189 = vadd.xlane.f32.xlu0 %v188
      %v190 = vpop.xlane.xlu0 %189
      %v191 = vadd.f32 %v190, 1e-05
      %v192 = vrcp.pop %v191
      %v193 = vmul.f32 %v184, %v192
      %194 = vst [vmem:[%s158] sm:$0x3] %v193
      %p195 = scmp.lt.s32.totalorder %s13, 1
      %s196 = scalar_select %p195, %s13, 1
      %s197 = smul.addr %s196, 2
      %s198 = scalar_lea.vmem %s2, %s197
      // Predicated region
      $region29: #{sspnet_forward.17} parent=27 // pred_check
        %p199 = pneg %p83
      $region30: #{sspnet_forward.17} parent=27 // pred_check_branch
        %201 = sbr.rel (%p199) target = $region32
      $region31: #{sspnet_forward.17} parent=27 // pred_region
        _
      $region32: #{sspnet_forward.17} parent=27 // pred_fallthru
        _
    $region28: #{sspnet_forward.17} parent=5 // pred_fallthru
      _
    %p202 = scmp.le.s32.totalorder 2, %s8
    // Predicated region
    $region33: #{sspnet_forward.17} parent=5 // pred_check
      %p203 = pneg %p202
    $region34: #{sspnet_forward.17} parent=5 // pred_check_branch
      %205 = sbr.rel (%p203) target = $region36
    $region35: #{sspnet_forward.17} parent=5 // pred_region
      %s206 = ssub.s32 %s8, 2
      // Predicated region
      $region37: #{sspnet_forward.17} parent=35 // pred_check
        %p207 = pneg %p89
      $region38: #{sspnet_forward.17} parent=35 // pred_check_branch
        %209 = sbr.rel (%p207) target = $region40
      $region39: #{sspnet_forward.17} parent=35 // pred_region
        %p210 = scmp.lt.s32.totalorder %s14, 1
        %s211 = scalar_select %p210, %s14, 1
        %s212 = smul.addr %s211, 2
        %s213 = scalar_lea.vmem %s2, %s212
      $region40: #{sspnet_forward.17} parent=35 // pred_fallthru
        _
    $region36: #{sspnet_forward.17} parent=5 // pred_fallthru
      _
  $region6: #{sspnet_forward.17} parent=0 // loop_footer
    %s12 = sadd.s32 1, %s8
  $region7: #{sspnet_forward.17} parent=0 // loop_footer_branch
    %7 = sbr.rel target = $region3
  $region8: #{sspnet_forward.17} parent=0 // loop_exit
    _

// kernel: sspnet_forward.19
$region0: #{sspnet_forward.19}
  #allocation0 [shape = 'u32[]', space=smem, size = 0x4, offset = 0x4, fixed_abs, tag = 'smem constant byte address 0x4 - core index']
  #allocation1 [shape = 'u32[72,128]{1,0:T(1,128)}', space=vmem, size = 0x9000, scoped, tag = 'internal scratch']
  %s0 = inlined_call_operand.vmem [shape: bf16[2,16,128], index: 0, kind: input, shape index: {}]
  %s1 = inlined_call_operand.vmem [shape: f32[2,2,128], index: 1, kind: input, shape index: {}]
  %s2 = inlined_call_operand.vmem [shape: f32[2,2,16], index: 2, kind: output, shape index: {}]
  %s3 = sld [smem:[#allocation0]]
  $region41: #{sspnet_forward.19} parent=0
    _
  %s5 = ssub.s32 1, %s3
  %s6 = scalar_select 0, %s5, %s3
  loop: start=0, step=1, limit=4
  $region2: #{sspnet_forward.19} parent=0 // loop_pre_header
    _
  $region3: #{sspnet_forward.19} parent=0 // loop_header
    %s8 = sphi 0, %s12
    %p9 = scmp.ge.s32.totalorder %s8, 4
    %s18 = sphi 0, %s20
    %s21 = sphi 0, %s18
    %s22 = sphi 0, %s21
    %s38 = sphi 0, %s22
    %s44 = sphi 0, %s46
    %s47 = sphi 0, %s44
    %s48 = sphi 0, %s47
    %s64 = sphi 0, %s48
    %s70 = sphi 0, %s72
    %s73 = sphi 0, %s70
    %s74 = sphi 0, %s73
    %s90 = sphi 0, %s74
  $region4: #{sspnet_forward.19} parent=0 // loop_header_branch
    %11 = sbr.rel (%p9) target = $region8
  $region5: #{sspnet_forward.19} parent=0 // loop_body
    %s13 = ssub.s32 %s8, 1
    %s14 = ssub.s32 %s8, 2
    %s15 = sadd.s32 %s8, 1
    %s16 = ssub.s32 %s8, %s15
    %p17 = scmp.eq.s32.totalorder %s16, 0
    %s19 = sadd.s32 %s18, 1
    %s20 = scalar_select %p17, %s18, %s19
    %p23 = pneg %p17
    %p24 = scmp.eq.s32.totalorder %s8, 1
    %p25 = por %p23, %p24
    %p26 = scmp.ne.s32.totalorder %s18, %s21
    %p27 = scmp.eq.s32.totalorder %s8, 0
    %p28 = por %p26, %p27
    %p29 = scmp.ne.s32.totalorder %s18, %s21
    %p30 = scmp.eq.s32.totalorder %s13, 1
    %p31 = por %p29, %p30
    %p32 = scmp.ne.s32.totalorder %s21, %s22
    %p33 = scmp.eq.s32.totalorder %s13, 0
    %p34 = por %p32, %p33
    %p35 = scmp.ne.s32.totalorder %s21, %s22
    %p36 = scmp.eq.s32.totalorder %s14, 1
    %p37 = por %p35, %p36
    %p39 = scmp.ne.s32.totalorder %s22, %s38
    %p40 = scmp.eq.s32.totalorder %s14, 0
    %p41 = por %p39, %p40
    %s42 = ssub.s32 %s8, %s15
    %p43 = scmp.eq.s32.totalorder %s42, 0
    %s45 = sadd.s32 %s44, 1
    %s46 = scalar_select %p43, %s44, %s45
    %p49 = pneg %p43
    %p50 = scmp.eq.s32.totalorder %s8, 1
    %p51 = por %p49, %p50
    %p52 = scmp.ne.s32.totalorder %s44, %s47
    %p53 = scmp.eq.s32.totalorder %s8, 0
    %p54 = por %p52, %p53
    %p55 = scmp.ne.s32.totalorder %s44, %s47
    %p56 = scmp.eq.s32.totalorder %s13, 1
    %p57 = por %p55, %p56
    %p58 = scmp.ne.s32.totalorder %s47, %s48
    %p59 = scmp.eq.s32.totalorder %s13, 0
    %p60 = por %p58, %p59
    %p61 = scmp.ne.s32.totalorder %s47, %s48
    %p62 = scmp.eq.s32.totalorder %s14, 1
    %p63 = por %p61, %p62
    %p65 = scmp.ne.s32.totalorder %s48, %s64
    %p66 = scmp.eq.s32.totalorder %s14, 0
    %p67 = por %p65, %p66
    %s68 = ssub.s32 %s8, %s15
    %p69 = scmp.eq.s32.totalorder %s68, 0
    %s71 = sadd.s32 %s70, 1
    %s72 = scalar_select %p69, %s70, %s71
    %p75 = pneg %p69
    %p76 = scmp.eq.s32.totalorder %s8, 1
    %p77 = por %p75, %p76
    %p78 = scmp.ne.s32.totalorder %s70, %s73
    %p79 = scmp.eq.s32.totalorder %s8, 0
    %p80 = por %p78, %p79
    %p81 = scmp.ne.s32.totalorder %s70, %s73
    %p82 = scmp.eq.s32.totalorder %s13, 1
    %p83 = por %p81, %p82
    %p84 = scmp.ne.s32.totalorder %s73, %s74
    %p85 = scmp.eq.s32.totalorder %s13, 0
    %p86 = por %p84, %p85
    %p87 = scmp.ne.s32.totalorder %s73, %s74
    %p88 = scmp.eq.s32.totalorder %s14, 1
    %p89 = por %p87, %p88
    %p91 = scmp.ne.s32.totalorder %s74, %s90
    %p92 = scmp.eq.s32.totalorder %s14, 0
    %p93 = por %p91, %p92
    %p94 = scmp.le.s32.totalorder 1, %s8
    %p95 = scmp.lt.s32.totalorder %s8, 3
    %p96 = pnand %p94, %p95
    %p97 = pneg %p96
    // Predicated region
    $region9: #{sspnet_forward.19} parent=5 // pred_check
      _
    $region10: #{sspnet_forward.19} parent=5 // pred_check_branch
      %99 = sbr.rel (%p96) target = $region12
    $region11: #{sspnet_forward.19} parent=5 // pred_region
      %s100 = ssub.s32 %s8, 1
    $region12: #{sspnet_forward.19} parent=5 // pred_fallthru
      _
    %p101 = scmp.lt.s32.totalorder %s8, 2
    // Predicated region
    $region13: #{sspnet_forward.19} parent=5 // pred_check
      %p102 = pneg %p101
    $region14: #{sspnet_forward.19} parent=5 // pred_check_branch
      %104 = sbr.rel (%p102) target = $region16
    $region15: #{sspnet_forward.19} parent=5 // pred_region
      // Predicated region
      $region17: #{sspnet_forward.19} parent=15 // pred_check
        %p105 = pneg %p28
      $region18: #{sspnet_forward.19} parent=15 // pred_check_branch
        %107 = sbr.rel (%p105) target = $region20
      $region19: #{sspnet_forward.19} parent=15 // pred_region
        %p108 = scmp.lt.s32.totalorder %s8, 1
        %s109 = scalar_select %p108, %s8, 1
        %s110 = smul.addr %s109, 2
        %s111 = smul.addr %s110, 4
        %s112 = scalar_lea.vmem %s0, %s111
      $region20: #{sspnet_forward.19} parent=15 // pred_fallthru
        _
      // Predicated region
      $region21: #{sspnet_forward.19} parent=15 // pred_check
        %p113 = pneg %p54
      $region22: #{sspnet_forward.19} parent=15 // pred_check_branch
        %115 = sbr.rel (%p113) target = $region24
      $region23: #{sspnet_forward.19} parent=15 // pred_region
        %p116 = scmp.lt.s32.totalorder %s8, 1
        %s117 = scalar_select %p116, %s8, 1
        %s118 = smul.addr %s117, 2
        %s119 = scalar_lea.vmem %s1, %s118
      $region24: #{sspnet_forward.19} parent=15 // pred_fallthru
        _
    $region16: #{sspnet_forward.19} parent=5 // pred_fallthru
      _
    %p120 = scmp.le.s32.totalorder 1, %s8
    %p121 = scmp.lt.s32.totalorder %s8, 3
    %p122 = pnand %p120, %p121
    %p123 = pneg %p122
    // Predicated region
    $region25: #{sspnet_forward.19} parent=5 // pred_check
      _
    $region26: #{sspnet_forward.19} parent=5 // pred_check_branch
      %125 = sbr.rel (%p122) target = $region28
    $region27: #{sspnet_forward.19} parent=5 // pred_region
      %s126 = ssub.s32 %s8, 1
      %p127 = scmp.lt.s32.totalorder %s13, 1
      %s128 = scalar_select %p127, %s13, 1
      %s129 = smul.addr %s128, 2
      %s130 = smul.addr %s129, 4
      %s131 = scalar_lea.vmem %s0, %s130
      %p132 = pneg %p34
      %p133 = pneg %p31
      %p134 = scmp.lt.s32.totalorder %s13, 1
      %s135 = scalar_select %p134, %s13, 1
      %s136 = smul.addr %s135, 2
      %s137 = scalar_lea.vmem %s1, %s136
      %p138 = pneg %p60
      %p139 = pneg %p57
      %p140 = pneg %p86
      %p141 = pneg %p83
      %p142 = scmp.lt.s32.totalorder %s13, 1
      %s143 = scalar_select %p142, %s13, 1
      %s144 = smul.addr %s143, 2
      %s145 = scalar_lea.vmem %s2, %s144
      %p146 = scmp.lt.s32.totalorder %s13, 1
      %s147 = scalar_select %p146, %s13, 1
      %s148 = smul.addr %s147, 2
      %s149 = smul.addr %s148, 4
      %s150 = scalar_lea.vmem %s0, %s149
      %p151 = scmp.lt.s32.totalorder %s13, 1
      %s152 = scalar_select %p151, %s13, 1
      %s153 = smul.addr %s152, 2
      %s154 = scalar_lea.vmem %s1, %s153
      %p155 = scmp.lt.s32.totalorder %s13, 1
      %s156 = scalar_select %p155, %s13, 1
      %s157 = smul.addr %s156, 2
      %s158 = scalar_lea.vmem %s2, %s157
      %v161 = vld [vmem:[%s150] sm:$0xf]
      %v162 = vld [vmem:[%s150 + $0x4] sm:$0xf]
      %v163 = vld [vmem:[%s154] sm:$0x3]
      %v164 = vunpack.c.l.bf16 %v161
      %v165 = vunpack.c.l.bf16 %v162
      %v166 = vmul.f32 %v164, %v164
      %v167 = vmul.f32 %v165, %v165
      %v168 = vpack.c.bf16 %v167, %v166
      %169 = vmatpush.bf16.xpose.msra.mxu0 0
      %170 = vmatpush.bf16.xpose.msra.mxu0 0
      %171 = vmatpush.bf16.xpose.msra.mxu0 0
      %172 = vmatpush.bf16.xpose.msra.mxu0 0
      %173 = vmatpush.bf16.xpose.msra.mxu0 0
      %174 = vmatpush.bf16.xpose.msra.mxu0 0
      %175 = vmatpush.bf16.xpose.msra.mxu0 0
      %176 = vmatpush.bf16.xpose.msra.mxu0 %v168
      %177 = vmatmul.bf16.gmra.mxu0 1065369472
      %v178 = vpop.f32.mrf.mxu0
      %v179 = vadd.f32 0.0, %v178
      %v180 = vpop.f32.mrf.mxu0
      %181 = vdwg.mxu0
      %v182 = vrsqrt.pop %v179
      %v183 = vmul.f32 %v182, %v179
      %v184 = vmul.f32 %v183, %v182
      %v185 = vmul.f32 0.5, %v184
      %v186 = vsub.f32 1.5, %v185
      %v187 = vmul.f32 %v182, %v186
      %v188 = vmul.f32 %v179, %v187
      %vm189 = vcmp.eq.f32.partialorder %v179, inf
      %v190 = vsel %vm189, %v179, %v188
      %vm191 = vcmp.eq.f32.partialorder %v179, 0.0
      %v192 = vand.u32 %v179, 2147483648
      %v193 = vsel %vm191, %v192, %v190
      %v194 = vmul.f32 %v163, %v163
      %vm195 = vcmask 1041408
      %v196 = vsel %vm195, %v194, 0.0
      %197 = vadd.xlane.f32.xlu0 %v196
      %v198 = vpop.xlane.xlu0 %197
      %v199 = vrsqrt.pop %v198
      %v200 = vmul.f32 %v199, %v198
      %v201 = vmul.f32 %v200, %v199
      %v202 = vmul.f32 0.5, %v201
      %v203 = vsub.f32 1.5, %v202
      %v204 = vmul.f32 %v199, %v203
      %v205 = vmul.f32 %v198, %v204
      %vm206 = vcmp.eq.f32.partialorder %v198, inf
      %v207 = vsel %vm206, %v198, %v205
      %vm208 = vcmp.eq.f32.partialorder %v198, 0.0
      %v209 = vand.u32 %v198, 2147483648
      %v210 = vsel %vm208, %v209, %v207
      %v211 = vpack.c.bf16 %v163, %v163
      %v214 = vunpack.c.l.b16 %v161
      %v215 = vunpack.c.l.b16 %v162
      %v216 = vpack.c.b16 %v215, %v214
      %218 = vmatpush.bf16.xpose.msra.mxu0 0
      %219 = vmatpush.bf16.xpose.msra.mxu0 0
      %220 = vmatpush.bf16.xpose.msra.mxu0 0
      %221 = vmatpush.bf16.xpose.msra.mxu0 0
      %222 = vmatpush.bf16.xpose.msra.mxu0 0
      %223 = vmatpush.bf16.xpose.msra.mxu0 0
      %224 = vmatpush.bf16.xpose.msra.mxu0 0
      %225 = vmatpush.bf16.xpose.msra.mxu0 %v216
      %226 = vmatmul.bf16.gmra.mxu0 %v211
      %v227 = vpop.f32.mrf.mxu0
      %v228 = vadd.f32 0.0, %v227
      %v229 = vpop.f32.mrf.mxu0
      %230 = vdwg.mxu0
      %v231 = vperm.slane %v193, 0
      %v232 = vmul.f32 %v231, %v210
      %v233 = vmax.f32 %v232, 1e-08
      %v234 = vrcp.pop %v233
      %v235 = vmul.f32 %v228, %v234
      %v236 = vmul.f32 %v235, 10.0
      %vm237 = vcmask 123904
      %238 = vst.msk [vmem:[%s158] sm:$0x3] %vm237, %v236
      %p239 = scmp.lt.s32.totalorder %s13, 1
      %s240 = scalar_select %p239, %s13, 1
      %s241 = smul.addr %s240, 2
      %s242 = scalar_lea.vmem %s2, %s241
      // Predicated region
      $region29: #{sspnet_forward.19} parent=27 // pred_check
        %p243 = pneg %p83
      $region30: #{sspnet_forward.19} parent=27 // pred_check_branch
        %245 = sbr.rel (%p243) target = $region32
      $region31: #{sspnet_forward.19} parent=27 // pred_region
        _
      $region32: #{sspnet_forward.19} parent=27 // pred_fallthru
        _
    $region28: #{sspnet_forward.19} parent=5 // pred_fallthru
      _
    %p246 = scmp.le.s32.totalorder 2, %s8
    // Predicated region
    $region33: #{sspnet_forward.19} parent=5 // pred_check
      %p247 = pneg %p246
    $region34: #{sspnet_forward.19} parent=5 // pred_check_branch
      %249 = sbr.rel (%p247) target = $region36
    $region35: #{sspnet_forward.19} parent=5 // pred_region
      %s250 = ssub.s32 %s8, 2
      // Predicated region
      $region37: #{sspnet_forward.19} parent=35 // pred_check
        %p251 = pneg %p89
      $region38: #{sspnet_forward.19} parent=35 // pred_check_branch
        %253 = sbr.rel (%p251) target = $region40
      $region39: #{sspnet_forward.19} parent=35 // pred_region
        %p254 = scmp.lt.s32.totalorder %s14, 1
        %s255 = scalar_select %p254, %s14, 1
        %s256 = smul.addr %s255, 2
        %s257 = scalar_lea.vmem %s2, %s256
      $region40: #{sspnet_forward.19} parent=35 // pred_fallthru
        _
    $region36: #{sspnet_forward.19} parent=5 // pred_fallthru
      _
  $region6: #{sspnet_forward.19} parent=0 // loop_footer
    %s12 = sadd.s32 1, %s8
  $region7: #{sspnet_forward.19} parent=0 // loop_footer_branch
    %7 = sbr.rel target = $region3
  $region8: #{sspnet_forward.19} parent=0 // loop_exit
    _

// kernel: sspnet_forward.21
$region0: #{sspnet_forward.21}
  #allocation0 [shape = 'u32[]', space=smem, size = 0x4, offset = 0x4, fixed_abs, tag = 'smem constant byte address 0x4 - core index']
  #allocation1 [shape = 'u32[72,128]{1,0:T(1,128)}', space=vmem, size = 0x9000, scoped, tag = 'internal scratch']
  #allocation2 [shape = 'bf16[16,128]{1,0:T(8,128)(2,1)}', space=vmem, size = 0x1000, scoped, tag = 'scratch operand']
  %s0 = inlined_call_operand.vmem [shape: bf16[2,16,128], index: 0, kind: input, shape index: {}]
  %s1 = inlined_call_operand.vmem [shape: f32[2,1,16], index: 1, kind: input, shape index: {}]
  %s2 = inlined_call_operand.vmem [shape: f32[2,1,128], index: 2, kind: input, shape index: {}]
  %s3 = inlined_call_operand.vmem [shape: f32[2,1,128], index: 3, kind: input, shape index: {}]
  %s4 = inlined_call_operand.vmem [shape: f32[2,2,16], index: 4, kind: output, shape index: {}]
  %s5 = sld [smem:[#allocation0]]
  $region53: #{sspnet_forward.21} parent=0
    _
  %s7 = ssub.s32 1, %s5
  %s8 = scalar_select 0, %s7, %s5
  loop: start=0, step=1, limit=4
  $region2: #{sspnet_forward.21} parent=0 // loop_pre_header
    _
  $region3: #{sspnet_forward.21} parent=0 // loop_header
    %s10 = sphi 0, %s14
    %p11 = scmp.ge.s32.totalorder %s10, 4
    %s17 = sphi 0, %s29
    %s18 = sphi 0, %s25
    %s19 = sphi 0, %s17
    %s20 = sphi 0, %s18
    %s21 = sphi 0, %s19
    %s22 = sphi 0, %s20
    %s32 = sphi 0, %s34
    %s35 = sphi 0, %s32
    %s36 = sphi 0, %s35
    %s52 = sphi 0, %s36
    %s58 = sphi 0, %s60
    %s61 = sphi 0, %s58
    %s62 = sphi 0, %s61
    %s78 = sphi 0, %s62
    %s84 = sphi 0, %s86
    %s87 = sphi 0, %s84
    %s88 = sphi 0, %s87
    %s104 = sphi 0, %s88
    %s110 = sphi 0, %s112
    %s113 = sphi 0, %s110
    %s114 = sphi 0, %s113
    %s130 = sphi 0, %s114
    %s138 = sphi 0, %s140
    %s141 = sphi 0, %s138
    %s142 = sphi 0, %s141
    %s158 = sphi 0, %s142
  $region4: #{sspnet_forward.21} parent=0 // loop_header_branch
    %13 = sbr.rel (%p11) target = $region8
  $region5: #{sspnet_forward.21} parent=0 // loop_body
    %s15 = ssub.s32 %s10, 1
    %s16 = ssub.s32 %s10, 2
    %s23 = sadd.s32 1, %s18
    %p24 = scmp.ge.s32.totalorder %s23, 1
    %s25 = scalar_select %p24, 0, %s23
    %s26 = sadd.s32 1, %s17
    %s27 = scalar_select %p24, %s26, %s17
    %p28 = scmp.ge.s32.totalorder %s27, 2
    %s29 = scalar_select %p28, 0, %s27
    %s30 = ssub.s32 %s17, %s29
    %p31 = scmp.eq.s32.totalorder %s30, 0
    %s33 = sadd.s32 %s32, 1
    %s34 = scalar_select %p31, %s32, %s33
    %p37 = pneg %p31
    %p38 = scmp.eq.s32.totalorder %s10, 1
    %p39 = por %p37, %p38
    %p40 = scmp.ne.s32.totalorder %s32, %s35
    %p41 = scmp.eq.s32.totalorder %s10, 0
    %p42 = por %p40, %p41
    %p43 = scmp.ne.s32.totalorder %s32, %s35
    %p44 = scmp.eq.s32.totalorder %s15, 1
    %p45 = por %p43, %p44
    %p46 = scmp.ne.s32.totalorder %s35, %s36
    %p47 = scmp.eq.s32.totalorder %s15, 0
    %p48 = por %p46, %p47
    %p49 = scmp.ne.s32.totalorder %s35, %s36
    %p50 = scmp.eq.s32.totalorder %s16, 1
    %p51 = por %p49, %p50
    %p53 = scmp.ne.s32.totalorder %s36, %s52
    %p54 = scmp.eq.s32.totalorder %s16, 0
    %p55 = por %p53, %p54
    %s56 = ssub.s32 %s17, %s29
    %p57 = scmp.eq.s32.totalorder %s56, 0
    %s59 = sadd.s32 %s58, 1
    %s60 = scalar_select %p57, %s58, %s59
    %p63 = pneg %p57
    %p64 = scmp.eq.s32.totalorder %s10, 1
    %p65 = por %p63, %p64
    %p66 = scmp.ne.s32.totalorder %s58, %s61
    %p67 = scmp.eq.s32.totalorder %s10, 0
    %p68 = por %p66, %p67
    %p69 = scmp.ne.s32.totalorder %s58, %s61
    %p70 = scmp.eq.s32.totalorder %s15, 1
    %p71 = por %p69, %p70
    %p72 = scmp.ne.s32.totalorder %s61, %s62
    %p73 = scmp.eq.s32.totalorder %s15, 0
    %p74 = por %p72, %p73
    %p75 = scmp.ne.s32.totalorder %s61, %s62
    %p76 = scmp.eq.s32.totalorder %s16, 1
    %p77 = por %p75, %p76
    %p79 = scmp.ne.s32.totalorder %s62, %s78
    %p80 = scmp.eq.s32.totalorder %s16, 0
    %p81 = por %p79, %p80
    %s82 = ssub.s32 %s17, %s29
    %p83 = scmp.eq.s32.totalorder %s82, 0
    %s85 = sadd.s32 %s84, 1
    %s86 = scalar_select %p83, %s84, %s85
    %p89 = pneg %p83
    %p90 = scmp.eq.s32.totalorder %s10, 1
    %p91 = por %p89, %p90
    %p92 = scmp.ne.s32.totalorder %s84, %s87
    %p93 = scmp.eq.s32.totalorder %s10, 0
    %p94 = por %p92, %p93
    %p95 = scmp.ne.s32.totalorder %s84, %s87
    %p96 = scmp.eq.s32.totalorder %s15, 1
    %p97 = por %p95, %p96
    %p98 = scmp.ne.s32.totalorder %s87, %s88
    %p99 = scmp.eq.s32.totalorder %s15, 0
    %p100 = por %p98, %p99
    %p101 = scmp.ne.s32.totalorder %s87, %s88
    %p102 = scmp.eq.s32.totalorder %s16, 1
    %p103 = por %p101, %p102
    %p105 = scmp.ne.s32.totalorder %s88, %s104
    %p106 = scmp.eq.s32.totalorder %s16, 0
    %p107 = por %p105, %p106
    %s108 = ssub.s32 %s17, %s29
    %p109 = scmp.eq.s32.totalorder %s108, 0
    %s111 = sadd.s32 %s110, 1
    %s112 = scalar_select %p109, %s110, %s111
    %p115 = pneg %p109
    %p116 = scmp.eq.s32.totalorder %s10, 1
    %p117 = por %p115, %p116
    %p118 = scmp.ne.s32.totalorder %s110, %s113
    %p119 = scmp.eq.s32.totalorder %s10, 0
    %p120 = por %p118, %p119
    %p121 = scmp.ne.s32.totalorder %s110, %s113
    %p122 = scmp.eq.s32.totalorder %s15, 1
    %p123 = por %p121, %p122
    %p124 = scmp.ne.s32.totalorder %s113, %s114
    %p125 = scmp.eq.s32.totalorder %s15, 0
    %p126 = por %p124, %p125
    %p127 = scmp.ne.s32.totalorder %s113, %s114
    %p128 = scmp.eq.s32.totalorder %s16, 1
    %p129 = por %p127, %p128
    %p131 = scmp.ne.s32.totalorder %s114, %s130
    %p132 = scmp.eq.s32.totalorder %s16, 0
    %p133 = por %p131, %p132
    %s134 = ssub.s32 %s17, %s29
    %s135 = ssub.s32 %s18, %s25
    %s136 = sor.u32 %s134, %s135
    %p137 = scmp.eq.s32.totalorder %s136, 0
    %s139 = sadd.s32 %s138, 1
    %s140 = scalar_select %p137, %s138, %s139
    %p143 = pneg %p137
    %p144 = scmp.eq.s32.totalorder %s10, 1
    %p145 = por %p143, %p144
    %p146 = scmp.ne.s32.totalorder %s138, %s141
    %p147 = scmp.eq.s32.totalorder %s10, 0
    %p148 = por %p146, %p147
    %p149 = scmp.ne.s32.totalorder %s138, %s141
    %p150 = scmp.eq.s32.totalorder %s15, 1
    %p151 = por %p149, %p150
    %p152 = scmp.ne.s32.totalorder %s141, %s142
    %p153 = scmp.eq.s32.totalorder %s15, 0
    %p154 = por %p152, %p153
    %p155 = scmp.ne.s32.totalorder %s141, %s142
    %p156 = scmp.eq.s32.totalorder %s16, 1
    %p157 = por %p155, %p156
    %p159 = scmp.ne.s32.totalorder %s142, %s158
    %p160 = scmp.eq.s32.totalorder %s16, 0
    %p161 = por %p159, %p160
    %p162 = scmp.le.s32.totalorder 1, %s10
    %p163 = scmp.lt.s32.totalorder %s10, 3
    %p164 = pnand %p162, %p163
    %p165 = pneg %p164
    // Predicated region
    $region9: #{sspnet_forward.21} parent=5 // pred_check
      _
    $region10: #{sspnet_forward.21} parent=5 // pred_check_branch
      %167 = sbr.rel (%p164) target = $region12
    $region11: #{sspnet_forward.21} parent=5 // pred_region
      %s168 = ssub.s32 %s10, 1
    $region12: #{sspnet_forward.21} parent=5 // pred_fallthru
      _
    %p169 = scmp.lt.s32.totalorder %s10, 2
    // Predicated region
    $region13: #{sspnet_forward.21} parent=5 // pred_check
      %p170 = pneg %p169
    $region14: #{sspnet_forward.21} parent=5 // pred_check_branch
      %172 = sbr.rel (%p170) target = $region16
    $region15: #{sspnet_forward.21} parent=5 // pred_region
      // Predicated region
      $region17: #{sspnet_forward.21} parent=15 // pred_check
        %p173 = pneg %p42
      $region18: #{sspnet_forward.21} parent=15 // pred_check_branch
        %175 = sbr.rel (%p173) target = $region20
      $region19: #{sspnet_forward.21} parent=15 // pred_region
        %p176 = scmp.lt.s32.totalorder %s17, 1
        %s177 = scalar_select %p176, %s17, 1
        %s178 = smul.addr %s177, 2
        %s179 = smul.addr %s178, 4
        %s180 = scalar_lea.vmem %s0, %s179
      $region20: #{sspnet_forward.21} parent=15 // pred_fallthru
        _
      // Predicated region
      $region21: #{sspnet_forward.21} parent=15 // pred_check
        %p181 = pneg %p68
      $region22: #{sspnet_forward.21} parent=15 // pred_check_branch
        %183 = sbr.rel (%p181) target = $region24
      $region23: #{sspnet_forward.21} parent=15 // pred_region
        %p184 = scmp.lt.s32.totalorder %s17, 1
        %s185 = scalar_select %p184, %s17, 1
        %s186 = scalar_lea.vmem %s1, %s185
      $region24: #{sspnet_forward.21} parent=15 // pred_fallthru
        _
      // Predicated region
      $region25: #{sspnet_forward.21} parent=15 // pred_check
        %p187 = pneg %p94
      $region26: #{sspnet_forward.21} parent=15 // pred_check_branch
        %189 = sbr.rel (%p187) target = $region28
      $region27: #{sspnet_forward.21} parent=15 // pred_region
        %p190 = scmp.lt.s32.totalorder %s17, 1
        %s191 = scalar_select %p190, %s17, 1
        %s192 = scalar_lea.vmem %s2, %s191
      $region28: #{sspnet_forward.21} parent=15 // pred_fallthru
        _
      // Predicated region
      $region29: #{sspnet_forward.21} parent=15 // pred_check
        %p193 = pneg %p120
      $region30: #{sspnet_forward.21} parent=15 // pred_check_branch
        %195 = sbr.rel (%p193) target = $region32
      $region31: #{sspnet_forward.21} parent=15 // pred_region
        %p196 = scmp.lt.s32.totalorder %s17, 1
        %s197 = scalar_select %p196, %s17, 1
        %s198 = scalar_lea.vmem %s3, %s197
      $region32: #{sspnet_forward.21} parent=15 // pred_fallthru
        _
    $region16: #{sspnet_forward.21} parent=5 // pred_fallthru
      _
    %p199 = scmp.le.s32.totalorder 1, %s10
    %p200 = scmp.lt.s32.totalorder %s10, 3
    %p201 = pnand %p199, %p200
    %p202 = pneg %p201
    // Predicated region
    $region33: #{sspnet_forward.21} parent=5 // pred_check
      _
    $region34: #{sspnet_forward.21} parent=5 // pred_check_branch
      %204 = sbr.rel (%p201) target = $region36
    $region35: #{sspnet_forward.21} parent=5 // pred_region
      %s205 = ssub.s32 %s10, 1
      %p206 = scmp.lt.s32.totalorder %s19, 1
      %s207 = scalar_select %p206, %s19, 1
      %s208 = smul.addr %s207, 2
      %s209 = smul.addr %s208, 4
      %s210 = scalar_lea.vmem %s0, %s209
      %p211 = pneg %p48
      %p212 = pneg %p45
      %p213 = scmp.lt.s32.totalorder %s19, 1
      %s214 = scalar_select %p213, %s19, 1
      %s215 = scalar_lea.vmem %s1, %s214
      %p216 = pneg %p74
      %p217 = pneg %p71
      %p218 = scmp.lt.s32.totalorder %s19, 1
      %s219 = scalar_select %p218, %s19, 1
      %s220 = scalar_lea.vmem %s2, %s219
      %p221 = pneg %p100
      %p222 = pneg %p97
      %p223 = scmp.lt.s32.totalorder %s19, 1
      %s224 = scalar_select %p223, %s19, 1
      %s225 = scalar_lea.vmem %s3, %s224
      %p226 = pneg %p126
      %p227 = pneg %p123
      %p228 = pneg %p154
      %p229 = pneg %p151
      %p230 = scmp.lt.s32.totalorder %s19, 1
      %s231 = scalar_select %p230, %s19, 1
      %p232 = scmp.lt.s32.totalorder %s20, 0
      %s233 = scalar_select %p232, %s20, 0
      %s234 = sadd.s32 %s233, %s231
      %s235 = smul.addr %s234, 2
      %s236 = scalar_lea.vmem %s4, %s235
      %p237 = scmp.lt.s32.totalorder %s19, 1
      %s238 = scalar_select %p237, %s19, 1
      %s239 = smul.addr %s238, 2
      %s240 = smul.addr %s239, 4
      %s241 = scalar_lea.vmem %s0, %s240
      %p242 = scmp.lt.s32.totalorder %s19, 1
      %s243 = scalar_select %p242, %s19, 1
      %s244 = scalar_lea.vmem %s1, %s243
      %p245 = scmp.lt.s32.totalorder %s19, 1
      %s246 = scalar_select %p245, %s19, 1
      %s247 = scalar_lea.vmem %s2, %s246
      %p248 = scmp.lt.s32.totalorder %s19, 1
      %s249 = scalar_select %p248, %s19, 1
      %s250 = scalar_lea.vmem %s3, %s249
      %p251 = scmp.lt.s32.totalorder %s19, 1
      %s252 = scalar_select %p251, %s19, 1
      %p253 = scmp.lt.s32.totalorder %s20, 0
      %s254 = scalar_select %p253, %s20, 0
      %s255 = sadd.s32 %s254, %s252
      %s256 = smul.addr %s255, 2
      %s257 = scalar_lea.vmem %s4, %s256
      %v259 = vld [vmem:[%s241] sm:$0xf]
      %v260 = vld [vmem:[%s241 + $0x4] sm:$0xf]
      %v261 = vld [vmem:[%s244] sm:$0x1]
      %v262 = vld [vmem:[%s247] sm:$0x1]
      %v263 = vld [vmem:[%s250] sm:$0x1]
      %p264 = scmp.eq.s32.totalorder %s20, 0
      // Predicated region
      $region37: #{sspnet_forward.21} parent=35 // pred_check
        %p265 = pneg %p264
      $region38: #{sspnet_forward.21} parent=35 // pred_check_branch
        %267 = sbr.rel (%p265) target = $region40
      $region39: #{sspnet_forward.21} parent=35 // pred_region
        %v268 = vunpack.c.l.bf16 %v259
        %v269 = vunpack.c.l.bf16 %v260
        %v270 = vmul.f32 %v268, %v268
        %v271 = vmul.f32 %v269, %v269
        %272 = vadd.xlane.f32.xlu0 %v270
        %v273 = vpop.xlane.xlu0 %272
        %274 = vadd.xlane.f32.xlu0 %v271
        %v275 = vpop.xlane.xlu0 %274
        %v276 = vadd.f32 %v273, 1e-12
        %v277 = vadd.f32 %v275, 1e-12
        %v278 = vrsqrt.pop %v276
        %v279 = vmul.f32 %v278, %v276
        %v280 = vmul.f32 %v279, %v278
        %v281 = vmul.f32 0.5, %v280
        %v282 = vsub.f32 1.5, %v281
        %v283 = vmul.f32 %v278, %v282
        %vm284 = vweird.f32 %v276
        %vm285 = vweird.f32 %v278
        %vm286 = vmor %vm284, %vm285
        %v287 = vsel %vm286, %v278, %v283
        %v288 = vrsqrt.pop %v277
        %v289 = vmul.f32 %v288, %v277
        %v290 = vmul.f32 %v289, %v288
        %v291 = vmul.f32 0.5, %v290
        %v292 = vsub.f32 1.5, %v291
        %v293 = vmul.f32 %v288, %v292
        %vm294 = vweird.f32 %v277
        %vm295 = vweird.f32 %v288
        %vm296 = vmor %vm294, %vm295
        %v297 = vsel %vm296, %v288, %v293
        %v298 = vmul.f32 %v268, %v287
        %v299 = vmul.f32 %v269, %v297
        %v300 = vpack.c.bf16 %v298, %v298
        %v301 = vpack.c.bf16 %v299, %v299
        %302 = vst [vmem:[#allocation2] sm:$0xf] %v300
        %303 = vst [vmem:[#allocation2 + $0x4] sm:$0xf] %v301
      $region40: #{sspnet_forward.21} parent=35 // pred_fallthru
        _
      %s304 = smul.u32 %s20, 16
      %s305 = sshra.s32 %s304, 3
      %s306 = sand.u32 %s304, 7
      %s307 = smul.addr %s305, 4
      %s308 = scalar_lea.vmem %s241, %s307
      %v309 = vld [vmem:[%s308] sm:$0xf]
      %v310 = vld [vmem:[%s308 + $0x4] sm:$0xf]
      %s311 = smul.addr %s305, 4
      %s312 = scalar_lea.vmem [#allocation2], %s311
      %v313 = vld [vmem:[%s312] sm:$0xf]
      %v314 = vld [vmem:[%s312 + $0x4] sm:$0xf]
      %v315 = vld [vmem:[#allocation2] sm:$0xf]
      %v316 = vld [vmem:[#allocation2 + $0x4] sm:$0xf]
      %v319 = vunpack.c.l.b16 %v313
      %v320 = vunpack.c.l.b16 %v314
      %v321 = vpack.c.b16 %v320, %v319
      %v325 = vunpack.c.l.b16 %v315
      %v326 = vunpack.c.l.b16 %v316
      %v327 = vpack.c.b16 %v326, %v325
      %329 = vmatpush.bf16.xpose.msra.mxu0 0
      %330 = vmatpush.bf16.xpose.msra.mxu0 0
      %331 = vmatpush.bf16.xpose.msra.mxu0 0
      %332 = vmatpush.bf16.xpose.msra.mxu0 0
      %333 = vmatpush.bf16.xpose.msra.mxu0 0
      %334 = vmatpush.bf16.xpose.msra.mxu0 0
      %335 = vmatpush.bf16.xpose.msra.mxu0 0
      %336 = vmatpush.bf16.xpose.msra.mxu0 %v327
      %337 = vmatmul.bf16.gmra.mxu0 %v321
      %v338 = vpop.f32.mrf.mxu0
      %v339 = vadd.f32 0.0, %v338
      %v340 = vpop.f32.mrf.mxu0
      %v341 = vadd.f32 0.0, %v340
      %342 = vdwg.mxu0
      %v343 = vmul.f32 %v339, 2.0
      %v344 = vmul.f32 %v341, 2.0
      %vm345 = vcmask 130048
      %v346 = vsel %vm345, %v343, -inf
      %347 = vmax.xlane.f32.xlu0 %v346
      %v348 = vpop.xlane.xlu0 %347
      %v349 = vsel %vm345, %v344, -inf
      %350 = vmax.xlane.f32.xlu0 %v349
      %v351 = vpop.xlane.xlu0 %350
      %v352 = vsub.f32 %v343, %v348
      %v353 = vsub.f32 %v344, %v351
      %v354 = vmul.f32 %v352, 1.442695
      %v355 = vpow.pop %v354
      %v356 = vmul.f32 %v353, 1.442695
      %v357 = vpow.pop %v356
      %v359 = vperm.slane %v261, 0
      %v361 = vmul.f32 %v355, %v359
      %v362 = vmul.f32 %v357, %v359
      %v363 = vsel %vm345, %v361, 0.0
      %364 = vadd.xlane.f32.xlu0 %v363
      %v365 = vpop.xlane.xlu0 %364
      %v366 = vsel %vm345, %v362, 0.0
      %367 = vadd.xlane.f32.xlu0 %v366
      %v368 = vpop.xlane.xlu0 %367
      %v369 = vrcp.pop %v365
      %v370 = vrcp.pop %v368
      %v371 = vmul.f32 %v361, %v369
      %v372 = vmul.f32 %v362, %v370
      %v373 = vpack.c.bf16 %v372, %v371
      %v376 = vunpack.c.l.b16 %v259
      %v377 = vunpack.c.l.b16 %v260
      %v378 = vpack.c.b16 %v377, %v376
      %v381 = vsel %vm345, %v373, 0
      %383 = vmatpush.bf16.msra.mxu0 0
      %384 = vmatpush.bf16.msra.mxu0 0
      %385 = vmatpush.bf16.msra.mxu0 0
      %386 = vmatpush.bf16.msra.mxu0 0
      %387 = vmatpush.bf16.msra.mxu0 0
      %388 = vmatpush.bf16.msra.mxu0 0
      %389 = vmatpush.bf16.msra.mxu0 0
      %390 = vmatpush.bf16.msra.mxu0 %v378
      %391 = vmatmul.bf16.gmra.mxu0 %v381
      %v392 = vpop.f32.mrf.mxu0
      %v393 = vadd.f32 0.0, %v392
      %v394 = vpop.f32.mrf.mxu0
      %v395 = vadd.f32 0.0, %v394
      %396 = vdwg.mxu0
      %v397 = vmul.f32 %v263, 0.3
      %v398 = vmul.f32 %v393, 0.7
      %v399 = vmul.f32 %v395, 0.7
      %v401 = vperm.slane %v397, 0
      %v403 = vadd.f32 %v401, %v398
      %v404 = vadd.f32 %v401, %v399
      %v405 = vunpack.c.l.bf16 %v309
      %v406 = vunpack.c.l.bf16 %v310
      %v407 = vmul.f32 %v405, %v405
      %v408 = vmul.f32 %v406, %v406
      %409 = vmatpush.xpose.msra.mxu0 0.0
      %410 = vmatpush.xpose.msra.mxu0 0.0
      %411 = vmatpush.xpose.msra.mxu0 0.0
      %412 = vmatpush.xpose.msra.mxu0 0.0
      %413 = vmatpush.xpose.msra.mxu0 0.0
      %414 = vmatpush.xpose.msra.mxu0 0.0
      %415 = vmatpush.xpose.msra.mxu0 0.0
      %416 = vmatpush.xpose.msra.mxu0 0.0
      %417 = vmatpush.xpose.msra.mxu0 0.0
      %418 = vmatpush.xpose.msra.mxu0 0.0
      %419 = vmatpush.xpose.msra.mxu0 0.0
      %420 = vmatpush.xpose.msra.mxu0 0.0
      %421 = vmatpush.xpose.msra.mxu0 0.0
      %422 = vmatpush.xpose.msra.mxu0 0.0
      %423 = vmatpush.xpose.msra.mxu0 %v408
      %424 = vmatpush.xpose.msra.mxu0 %v407
      %425 = vmatmul.f32.gmra.mxu0 1.0
      %v426 = vpop.f32.mrf.mxu0
      %v427 = vadd.f32 0.0, %v426
      %428 = vdwg.mxu0
      %v429 = vrsqrt.pop %v427
      %v430 = vmul.f32 %v429, %v427
      %v431 = vmul.f32 %v430, %v429
      %v432 = vmul.f32 0.5, %v431
      %v433 = vsub.f32 1.5, %v432
      %v434 = vmul.f32 %v429, %v433
      %v435 = vmul.f32 %v427, %v434
      %vm436 = vcmp.eq.f32.partialorder %v427, inf
      %v437 = vsel %vm436, %v427, %v435
      %vm438 = vcmp.eq.f32.partialorder %v427, 0.0
      %v439 = vand.u32 %v427, 2147483648
      %v440 = vsel %vm438, %v439, %v437
      %v441 = vmul.f32 %v403, %v403
      %v442 = vmul.f32 %v404, %v404
      %443 = vmatpush.xpose.msra.mxu0 0.0
      %444 = vmatpush.xpose.msra.mxu0 0.0
      %445 = vmatpush.xpose.msra.mxu0 0.0
      %446 = vmatpush.xpose.msra.mxu0 0.0
      %447 = vmatpush.xpose.msra.mxu0 0.0
      %448 = vmatpush.xpose.msra.mxu0 0.0
      %449 = vmatpush.xpose.msra.mxu0 0.0
      %450 = vmatpush.xpose.msra.mxu0 0.0
      %451 = vmatpush.xpose.msra.mxu0 0.0
      %452 = vmatpush.xpose.msra.mxu0 0.0
      %453 = vmatpush.xpose.msra.mxu0 0.0
      %454 = vmatpush.xpose.msra.mxu0 0.0
      %455 = vmatpush.xpose.msra.mxu0 0.0
      %456 = vmatpush.xpose.msra.mxu0 0.0
      %457 = vmatpush.xpose.msra.mxu0 %v442
      %458 = vmatpush.xpose.msra.mxu0 %v441
      %459 = vmatmul.f32.gmra.mxu0 1.0
      %v460 = vpop.f32.mrf.mxu0
      %v461 = vadd.f32 0.0, %v460
      %462 = vdwg.mxu0
      %v463 = vrsqrt.pop %v461
      %v464 = vmul.f32 %v463, %v461
      %v465 = vmul.f32 %v464, %v463
      %v466 = vmul.f32 0.5, %v465
      %v467 = vsub.f32 1.5, %v466
      %v468 = vmul.f32 %v463, %v467
      %v469 = vmul.f32 %v461, %v468
      %vm470 = vcmp.eq.f32.partialorder %v461, inf
      %v471 = vsel %vm470, %v461, %v469
      %vm472 = vcmp.eq.f32.partialorder %v461, 0.0
      %v473 = vand.u32 %v461, 2147483648
      %v474 = vsel %vm472, %v473, %v471
      %v475 = vmul.f32 %v262, %v262
      %vm476 = vcmask 1040384
      %v477 = vsel %vm476, %v475, 0.0
      %478 = vadd.xlane.f32.xlu0 %v477
      %v479 = vpop.xlane.xlu0 %478
      %v480 = vrsqrt.pop %v479
      %v481 = vmul.f32 %v480, %v479
      %v482 = vmul.f32 %v481, %v480
      %v483 = vmul.f32 0.5, %v482
      %v484 = vsub.f32 1.5, %v483
      %v485 = vmul.f32 %v480, %v484
      %v486 = vmul.f32 %v479, %v485
      %vm487 = vcmp.eq.f32.partialorder %v479, inf
      %v488 = vsel %vm487, %v479, %v486
      %vm489 = vcmp.eq.f32.partialorder %v479, 0.0
      %v490 = vand.u32 %v479, 2147483648
      %v491 = vsel %vm489, %v490, %v488
      %v492 = vmul.f32 %v405, %v403
      %v493 = vmul.f32 %v406, %v404
      %494 = vmatpush.xpose.msra.mxu0 0.0
      %495 = vmatpush.xpose.msra.mxu0 0.0
      %496 = vmatpush.xpose.msra.mxu0 0.0
      %497 = vmatpush.xpose.msra.mxu0 0.0
      %498 = vmatpush.xpose.msra.mxu0 0.0
      %499 = vmatpush.xpose.msra.mxu0 0.0
      %500 = vmatpush.xpose.msra.mxu0 0.0
      %501 = vmatpush.xpose.msra.mxu0 0.0
      %502 = vmatpush.xpose.msra.mxu0 0.0
      %503 = vmatpush.xpose.msra.mxu0 0.0
      %504 = vmatpush.xpose.msra.mxu0 0.0
      %505 = vmatpush.xpose.msra.mxu0 0.0
      %506 = vmatpush.xpose.msra.mxu0 0.0
      %507 = vmatpush.xpose.msra.mxu0 0.0
      %508 = vmatpush.xpose.msra.mxu0 %v493
      %509 = vmatpush.xpose.msra.mxu0 %v492
      %510 = vmatmul.f32.gmra.mxu0 1.0
      %v511 = vpop.f32.mrf.mxu0
      %v512 = vadd.f32 0.0, %v511
      %513 = vdwg.mxu0
      %v514 = vpack.c.bf16 %v262, %v262
      %v517 = vunpack.c.l.b16 %v309
      %v518 = vunpack.c.l.b16 %v310
      %v519 = vpack.c.b16 %v518, %v517
      %521 = vmatpush.bf16.xpose.msra.mxu0 0
      %522 = vmatpush.bf16.xpose.msra.mxu0 0
      %523 = vmatpush.bf16.xpose.msra.mxu0 0
      %524 = vmatpush.bf16.xpose.msra.mxu0 0
      %525 = vmatpush.bf16.xpose.msra.mxu0 0
      %526 = vmatpush.bf16.xpose.msra.mxu0 0
      %527 = vmatpush.bf16.xpose.msra.mxu0 0
      %528 = vmatpush.bf16.xpose.msra.mxu0 %v519
      %529 = vmatmul.bf16.gmra.mxu0 %v514
      %v530 = vpop.f32.mrf.mxu0
      %v531 = vadd.f32 0.0, %v530
      %v532 = vpop.f32.mrf.mxu0
      %533 = vdwg.mxu0
      %v534 = vmul.f32 %v440, %v474
      %v535 = vmax.f32 %v534, 1e-08
      %v536 = vrcp.pop %v535
      %v537 = vmul.f32 %v512, %v536
      %v538 = vmul.f32 %v440, %v491
      %v539 = vmax.f32 %v538, 1e-08
      %v540 = vrcp.pop %v539
      %v541 = vmul.f32 %v531, %v540
      %v543 = vrot.slane %v541, 7
      %v545 = vsel %vm476, %v537, %v543
      %v546 = vmul.f32 %v545, 10.0
      %vm547 = vcmask 123904
      %548 = vst.msk [vmem:[%s257] sm:$0x3] %vm547, %v546
      %p549 = scmp.lt.s32.totalorder %s19, 1
      %s550 = scalar_select %p549, %s19, 1
      %p551 = scmp.lt.s32.totalorder %s20, 0
      %s552 = scalar_select %p551, %s20, 0
      %s553 = sadd.s32 %s552, %s550
      %s554 = smul.addr %s553, 2
      %s555 = scalar_lea.vmem %s4, %s554
      // Predicated region
      $region41: #{sspnet_forward.21} parent=35 // pred_check
        %p556 = pneg %p151
      $region42: #{sspnet_forward.21} parent=35 // pred_check_branch
        %558 = sbr.rel (%p556) target = $region44
      $region43: #{sspnet_forward.21} parent=35 // pred_region
        _
      $region44: #{sspnet_forward.21} parent=35 // pred_fallthru
        _
    $region36: #{sspnet_forward.21} parent=5 // pred_fallthru
      _
    %p559 = scmp.le.s32.totalorder 2, %s10
    // Predicated region
    $region45: #{sspnet_forward.21} parent=5 // pred_check
      %p560 = pneg %p559
    $region46: #{sspnet_forward.21} parent=5 // pred_check_branch
      %562 = sbr.rel (%p560) target = $region48
    $region47: #{sspnet_forward.21} parent=5 // pred_region
      %s563 = ssub.s32 %s10, 2
      // Predicated region
      $region49: #{sspnet_forward.21} parent=47 // pred_check
        %p564 = pneg %p157
      $region50: #{sspnet_forward.21} parent=47 // pred_check_branch
        %566 = sbr.rel (%p564) target = $region52
      $region51: #{sspnet_forward.21} parent=47 // pred_region
        %p567 = scmp.lt.s32.totalorder %s21, 1
        %s568 = scalar_select %p567, %s21, 1
        %p569 = scmp.lt.s32.totalorder %s22, 0
        %s570 = scalar_select %p569, %s22, 0
        %s571 = sadd.s32 %s570, %s568
        %s572 = smul.addr %s571, 2
        %s573 = scalar_lea.vmem %s4, %s572
      $region52: #{sspnet_forward.21} parent=47 // pred_fallthru
        _
    $region48: #{sspnet_forward.21} parent=5 // pred_fallthru
      _
  $region6: #{sspnet_forward.21} parent=0 // loop_footer
    %s14 = sadd.s32 1, %s10
  $region7: #{sspnet_forward.21} parent=0 // loop_footer_branch
    %9 = sbr.rel target = $region3
  $region8: #{sspnet_forward.21} parent=0 // loop_exit
    _

</llo_original>
